<compile_context>
chip_gen: v7x
topology: tpu7x:2x2x1
jax: 0.10.0
libtpu: 0.0.40
codegen_flags: <defaults>
</compile_context>

<pallas_src>
import math

import jax
import jax.numpy as jnp
import numpy as np
from jax.experimental import pallas as pl
from jax.experimental.pallas import tpu as pltpu

# ---- small synthetic config ----
B, S, H = 2, 8, 32          # batch, seq_len, hidden_size
NH = 4                      # num_attention_heads
HD = H // NH                # attention_head_size
I = 64                      # intermediate_size
EPS = 1e-12                 # layer_norm_eps


def bert_layer_kernel(x_ref, mask_ref,
                      wq_ref, bq_ref, wk_ref, bk_ref, wv_ref, bv_ref,
                      wad_ref, bad_ref, g1_ref, be1_ref,
                      wi_ref, bi_ref, wo_ref, bo_ref, g2_ref, be2_ref,
                      out_ref, ctx_ref):
    # Single invocation: full (B*S, H) tensor in VMEM.
    x = x_ref[...]                                        # (B*S, H)

    # Hoist the additive-mask broadcast out of the head loop (done once).
    mask = jnp.broadcast_to(mask_ref[...], (B, S, S))     # (B, S, S)

    # --- Q / K / V projections on the flattened tokens (one MXU matmul each) ---
    q = jnp.dot(x, wq_ref[...], preferred_element_type=jnp.float32) + bq_ref[...]
    k = jnp.dot(x, wk_ref[...], preferred_element_type=jnp.float32) + bk_ref[...]
    v = jnp.dot(x, wv_ref[...], preferred_element_type=jnp.float32) + bv_ref[...]

    # Split tokens back into (B, S, H); last (lane) dim unchanged -> cheap reshape.
    q3 = q.reshape(B, S, H)
    k3 = k.reshape(B, S, H)
    v3 = v.reshape(B, S, H)

    inv_sqrt_hd = 1.0 / math.sqrt(HD)

    # --- multi-head attention: batched-over-B dot_generals per head (static loop) ---
    for h in range(NH):
        sl = slice(h * HD, (h + 1) * HD)
        qh, kh, vh = q3[:, :, sl], k3[:, :, sl], v3[:, :, sl]        # (B, S, HD)
        s = jnp.einsum('bqd,bkd->bqk', qh, kh,
                       preferred_element_type=jnp.float32)           # (B, S, S)
        s = s * inv_sqrt_hd + mask
        s = s - jnp.max(s, axis=-1, keepdims=True)
        e = jnp.exp(s)
        p = e * pl.reciprocal(jnp.sum(e, axis=-1, keepdims=True), approx=False)
        ctx_ref[:, :, sl] = jnp.einsum('bqk,bkd->bqd', p, vh,
                                       preferred_element_type=jnp.float32)

    ctx = ctx_ref[...].reshape(B * S, H)                   # head-concat == torch view order

    def layer_norm(z, g, b):
        mu = jnp.mean(z, axis=-1, keepdims=True)
        var = jnp.mean((z - mu) ** 2, axis=-1, keepdims=True)
        return (z - mu) * jax.lax.rsqrt(var + EPS) * g + b

    # --- add & norm #1 ---
    attn_dense = jnp.dot(ctx, wad_ref[...], preferred_element_type=jnp.float32) + bad_ref[...]
    attn_out = layer_norm(x + attn_dense, g1_ref[...], be1_ref[...])

    # --- feed-forward (exact erf GELU, same as F.gelu default) ---
    interm = jnp.dot(attn_out, wi_ref[...], preferred_element_type=jnp.float32) + bi_ref[...]
    interm = 0.5 * interm * (1.0 + jax.lax.erf(interm * (1.0 / math.sqrt(2.0))))
    ffn = jnp.dot(interm, wo_ref[...], preferred_element_type=jnp.float32) + bo_ref[...]

    # --- add & norm #2 ---
    out_ref[...] = layer_norm(attn_out + ffn, g2_ref[...], be2_ref[...])


def _full_spec(arr):
    zeros = (0,) * arr.ndim
    return pl.BlockSpec(arr.shape, lambda: zeros)


def bert_layer(x, mask, params):
    (wq, bq, wk, bk, wv, bv, wad, bad, g1, be1, wi, bi, wo, bo, g2, be2) = params

    x2 = x.reshape(B * S, H)            # flatten tokens for the kernel matmuls
    mask2 = mask.reshape(B, 1, S)       # drop the two singleton dims to a compact block

    operands = (x2, mask2,
                wq, bq, wk, bk, wv, bv,
                wad, bad, g1, be1,
                wi, bi, wo, bo, g2, be2)

    out = pl.pallas_call(
        bert_layer_kernel,
        out_shape=jax.ShapeDtypeStruct((B * S, H), jnp.float32),
        in_specs=[_full_spec(a) for a in operands],
        out_specs=pl.BlockSpec((B * S, H), lambda: (0, 0)),
        scratch_shapes=[pltpu.VMEM((B, S, H), jnp.float32)],   # context assembly buffer
    )(*operands)

    return out.reshape(B, S, H)


# ---------------- pure-JAX reference (mirrors the PyTorch module) ----------------
def bert_layer_ref(x, mask, params):
    (wq, bq, wk, bk, wv, bv, wad, bad, g1, be1, wi, bi, wo, bo, g2, be2) = params

    def ln(z, g, b):
        mu = jnp.mean(z, axis=-1, keepdims=True)
        var = jnp.mean((z - mu) ** 2, axis=-1, keepdims=True)
        return (z - mu) / jnp.sqrt(var + EPS) * g + b

    q = (x @ wq + bq).reshape(B, S, NH, HD).transpose(0, 2, 1, 3)
    k = (x @ wk + bk).reshape(B, S, NH, HD).transpose(0, 2, 1, 3)
    v = (x @ wv + bv).reshape(B, S, NH, HD).transpose(0, 2, 1, 3)
    scores = jnp.einsum("bhqd,bhkd->bhqk", q, k) / math.sqrt(HD) + mask
    probs = jax.nn.softmax(scores, axis=-1)
    ctx = jnp.einsum("bhqk,bhkd->bhqd", probs, v).transpose(0, 2, 1, 3).reshape(B, S, H)
    attn_out = ln(x + (ctx @ wad + bad), g1, be1)
    interm = jax.nn.gelu(attn_out @ wi + bi, approximate=False)
    return ln(attn_out + (interm @ wo + bo), g2, be2)


if __name__ == "__main__":
    key = jax.random.PRNGKey(0)
    keys = jax.random.split(key, 16)

    def w(k, shape, scale=0.02):
        return (scale * jax.random.normal(k, shape)).astype(jnp.float32)

    # Linear weights stored as (in, out) == torch weight.T ; biases as (1, out).
    params = (
        w(keys[0], (H, H)), w(keys[1], (1, H)),      # query
        w(keys[2], (H, H)), w(keys[3], (1, H)),      # key
        w(keys[4], (H, H)), w(keys[5], (1, H)),      # value
        w(keys[6], (H, H)), w(keys[7], (1, H)),      # attention_dense
        jnp.ones((1, H), jnp.float32), jnp.zeros((1, H), jnp.float32),   # LN1
        w(keys[8], (H, I)), w(keys[9], (1, I)),      # interm_dense
        w(keys[10], (I, H)), w(keys[11], (1, H)),    # out_dense
        jnp.ones((1, H), jnp.float32), jnp.zeros((1, H), jnp.float32),   # LN2
    )

    hidden_states = jax.random.normal(keys[12], (B, S, H), dtype=jnp.float32)
    # attention_mask: [bs, 1, 1, seq]; 0 = attend, -10000 = masked (last 2 positions of batch 1)
    mask = jnp.zeros((B, 1, 1, S), dtype=jnp.float32)
    mask = mask.at[1, 0, 0, -2:].set(-10000.0)

    out = bert_layer(hidden_states, mask, params)
    out = jax.block_until_ready(out)

    ref = bert_layer_ref(hidden_states, mask, params)
    np.testing.assert_allclose(np.asarray(out), np.asarray(ref), rtol=1e-5, atol=1e-5)
    print("KERNEL_OK")
</pallas_src>

<mosaic_0001>
module attributes {stable_mosaic.version = 11 : i64} {
  func.func @bert_layer_kernel(%arg0: memref<16x32xf32, #tpu.memory_space<vmem>>, %arg1: memref<2x1x8xf32, #tpu.memory_space<vmem>>, %arg2: memref<32x32xf32, #tpu.memory_space<vmem>>, %arg3: memref<1x32xf32, #tpu.memory_space<vmem>>, %arg4: memref<32x32xf32, #tpu.memory_space<vmem>>, %arg5: memref<1x32xf32, #tpu.memory_space<vmem>>, %arg6: memref<32x32xf32, #tpu.memory_space<vmem>>, %arg7: memref<1x32xf32, #tpu.memory_space<vmem>>, %arg8: memref<32x32xf32, #tpu.memory_space<vmem>>, %arg9: memref<1x32xf32, #tpu.memory_space<vmem>>, %arg10: memref<1x32xf32, #tpu.memory_space<vmem>>, %arg11: memref<1x32xf32, #tpu.memory_space<vmem>>, %arg12: memref<32x64xf32, #tpu.memory_space<vmem>>, %arg13: memref<1x64xf32, #tpu.memory_space<vmem>>, %arg14: memref<64x32xf32, #tpu.memory_space<vmem>>, %arg15: memref<1x32xf32, #tpu.memory_space<vmem>>, %arg16: memref<1x32xf32, #tpu.memory_space<vmem>>, %arg17: memref<1x32xf32, #tpu.memory_space<vmem>>, %arg18: memref<16x32xf32, #tpu.memory_space<vmem>>, %arg19: memref<2x8x32xf32, #tpu.memory_space<vmem>>) attributes {dimension_semantics = [], scalar_prefetch = 0 : i64, scratch_operands = 1 : i64, tpu.core_type = #tpu.core_type<tc>} {
    %c0 = arith.constant 0 : index
    %c0_0 = arith.constant 0 : index
    %0 = vector.load %arg0[%c0, %c0_0] : memref<16x32xf32, #tpu.memory_space<vmem>>, vector<16x32xf32>
    %c0_1 = arith.constant 0 : index
    %c0_2 = arith.constant 0 : index
    %c0_3 = arith.constant 0 : index
    %1 = vector.load %arg1[%c0_1, %c0_2, %c0_3] : memref<2x1x8xf32, #tpu.memory_space<vmem>>, vector<2x1x8xf32>
    %2 = vector.shape_cast %1 : vector<2x1x8xf32> to vector<2x1x8xf32>
    %3 = vector.broadcast %2 : vector<2x1x8xf32> to vector<2x8x8xf32>
    %c0_4 = arith.constant 0 : index
    %c0_5 = arith.constant 0 : index
    %4 = vector.load %arg2[%c0_4, %c0_5] : memref<32x32xf32, #tpu.memory_space<vmem>>, vector<32x32xf32>
    %cst = arith.constant dense<0.000000e+00> : vector<16x32xf32>
    %5 = tpu.matmul %0, %4, %cst {dimension_numbers = #tpu.dot_dimension_numbers<[1], [0], [0], [1], [0, 0, 1, 1], [], []>} : vector<16x32xf32>, vector<32x32xf32>, vector<16x32xf32> -> vector<16x32xf32>
    %c0_6 = arith.constant 0 : index
    %c0_7 = arith.constant 0 : index
    %6 = vector.load %arg3[%c0_6, %c0_7] : memref<1x32xf32, #tpu.memory_space<vmem>>, vector<1x32xf32>
    %7 = vector.broadcast %6 : vector<1x32xf32> to vector<16x32xf32>
    %8 = arith.addf %5, %7 : vector<16x32xf32>
    %c0_8 = arith.constant 0 : index
    %c0_9 = arith.constant 0 : index
    %9 = vector.load %arg4[%c0_8, %c0_9] : memref<32x32xf32, #tpu.memory_space<vmem>>, vector<32x32xf32>
    %cst_10 = arith.constant dense<0.000000e+00> : vector<16x32xf32>
    %10 = tpu.matmul %0, %9, %cst_10 {dimension_numbers = #tpu.dot_dimension_numbers<[1], [0], [0], [1], [0, 0, 1, 1], [], []>} : vector<16x32xf32>, vector<32x32xf32>, vector<16x32xf32> -> vector<16x32xf32>
    %c0_11 = arith.constant 0 : index
    %c0_12 = arith.constant 0 : index
    %11 = vector.load %arg5[%c0_11, %c0_12] : memref<1x32xf32, #tpu.memory_space<vmem>>, vector<1x32xf32>
    %12 = vector.broadcast %11 : vector<1x32xf32> to vector<16x32xf32>
    %13 = arith.addf %10, %12 : vector<16x32xf32>
    %c0_13 = arith.constant 0 : index
    %c0_14 = arith.constant 0 : index
    %14 = vector.load %arg6[%c0_13, %c0_14] : memref<32x32xf32, #tpu.memory_space<vmem>>, vector<32x32xf32>
    %cst_15 = arith.constant dense<0.000000e+00> : vector<16x32xf32>
    %15 = tpu.matmul %0, %14, %cst_15 {dimension_numbers = #tpu.dot_dimension_numbers<[1], [0], [0], [1], [0, 0, 1, 1], [], []>} : vector<16x32xf32>, vector<32x32xf32>, vector<16x32xf32> -> vector<16x32xf32>
    %c0_16 = arith.constant 0 : index
    %c0_17 = arith.constant 0 : index
    %16 = vector.load %arg7[%c0_16, %c0_17] : memref<1x32xf32, #tpu.memory_space<vmem>>, vector<1x32xf32>
    %17 = vector.broadcast %16 : vector<1x32xf32> to vector<16x32xf32>
    %18 = arith.addf %15, %17 : vector<16x32xf32>
    %19 = vector.shape_cast %8 : vector<16x32xf32> to vector<2x8x32xf32>
    %20 = vector.shape_cast %13 : vector<16x32xf32> to vector<2x8x32xf32>
    %21 = vector.shape_cast %18 : vector<16x32xf32> to vector<2x8x32xf32>
    %22 = vector.extract_strided_slice %19 {offsets = [0, 0, 0], sizes = [2, 8, 8], strides = [1, 1, 1]} : vector<2x8x32xf32> to vector<2x8x8xf32>
    %23 = vector.extract_strided_slice %20 {offsets = [0, 0, 0], sizes = [2, 8, 8], strides = [1, 1, 1]} : vector<2x8x32xf32> to vector<2x8x8xf32>
    %24 = vector.extract_strided_slice %21 {offsets = [0, 0, 0], sizes = [2, 8, 8], strides = [1, 1, 1]} : vector<2x8x32xf32> to vector<2x8x8xf32>
    "tpu.trace_start"() <{level = 10 : i32, message = "bqd,bkd->bqk"}> : () -> ()
    %cst_18 = arith.constant dense<0.000000e+00> : vector<2x8x8xf32>
    %25 = tpu.matmul %22, %23, %cst_18 {dimension_numbers = #tpu.dot_dimension_numbers<[2], [2], [1], [1], [0, 0, 0, 1, 1, 1], [0], [0]>} : vector<2x8x8xf32>, vector<2x8x8xf32>, vector<2x8x8xf32> -> vector<2x8x8xf32>
    "tpu.trace_stop"() : () -> ()
    %cst_19 = arith.constant 0.353553385 : f32
    %26 = vector.broadcast %cst_19 : f32 to vector<2x8x8xf32>
    %27 = arith.mulf %25, %26 : vector<2x8x8xf32>
    %28 = arith.addf %27, %3 : vector<2x8x8xf32>
    %cst_20 = arith.constant dense<0xFF800000> : vector<2x8xf32>
    %29 = vector.multi_reduction <maximumf>, %28, %cst_20 [2] : vector<2x8x8xf32> to vector<2x8xf32>
    %30 = vector.shape_cast %29 : vector<2x8xf32> to vector<2x8x1xf32>
    %31 = vector.broadcast %30 : vector<2x8x1xf32> to vector<2x8x8xf32>
    %32 = arith.subf %28, %31 : vector<2x8x8xf32>
    %33 = math.exp %32 : vector<2x8x8xf32>
    %cst_21 = arith.constant dense<0.000000e+00> : vector<2x8xf32>
    %34 = vector.multi_reduction <add>, %33, %cst_21 [2] : vector<2x8x8xf32> to vector<2x8xf32>
    %35 = vector.shape_cast %34 : vector<2x8xf32> to vector<2x8x1xf32>
    %36 = tpu.reciprocal %35 : vector<2x8x1xf32> -> vector<2x8x1xf32>
    %37 = vector.broadcast %36 : vector<2x8x1xf32> to vector<2x8x8xf32>
    %38 = arith.mulf %33, %37 : vector<2x8x8xf32>
    "tpu.trace_start"() <{level = 10 : i32, message = "bqk,bkd->bqd"}> : () -> ()
    %cst_22 = arith.constant dense<0.000000e+00> : vector<2x8x8xf32>
    %39 = tpu.matmul %38, %24, %cst_22 {dimension_numbers = #tpu.dot_dimension_numbers<[2], [1], [1], [2], [0, 0, 0, 1, 1, 2], [0], [0]>} : vector<2x8x8xf32>, vector<2x8x8xf32>, vector<2x8x8xf32> -> vector<2x8x8xf32>
    "tpu.trace_stop"() : () -> ()
    %c0_23 = arith.constant 0 : index
    %c0_24 = arith.constant 0 : index
    %c0_25 = arith.constant 0 : index
    %40 = vector.load %arg19[%c0_23, %c0_24, %c0_25] : memref<2x8x32xf32, #tpu.memory_space<vmem>>, vector<2x8x8xf32>
    tpu.vector_store %arg19[%c0_23, %c0_24, %c0_25], %39 {strides = array<i32>} : memref<2x8x32xf32, #tpu.memory_space<vmem>>, vector<2x8x8xf32>,
    %41 = vector.extract_strided_slice %19 {offsets = [0, 0, 8], sizes = [2, 8, 8], strides = [1, 1, 1]} : vector<2x8x32xf32> to vector<2x8x8xf32>
    %42 = vector.extract_strided_slice %20 {offsets = [0, 0, 8], sizes = [2, 8, 8], strides = [1, 1, 1]} : vector<2x8x32xf32> to vector<2x8x8xf32>
    %43 = vector.extract_strided_slice %21 {offsets = [0, 0, 8], sizes = [2, 8, 8], strides = [1, 1, 1]} : vector<2x8x32xf32> to vector<2x8x8xf32>
    "tpu.trace_start"() <{level = 10 : i32, message = "bqd,bkd->bqk"}> : () -> ()
    %cst_26 = arith.constant dense<0.000000e+00> : vector<2x8x8xf32>
    %44 = tpu.matmul %41, %42, %cst_26 {dimension_numbers = #tpu.dot_dimension_numbers<[2], [2], [1], [1], [0, 0, 0, 1, 1, 1], [0], [0]>} : vector<2x8x8xf32>, vector<2x8x8xf32>, vector<2x8x8xf32> -> vector<2x8x8xf32>
    "tpu.trace_stop"() : () -> ()
    %cst_27 = arith.constant 0.353553385 : f32
    %45 = vector.broadcast %cst_27 : f32 to vector<2x8x8xf32>
    %46 = arith.mulf %44, %45 : vector<2x8x8xf32>
    %47 = arith.addf %46, %3 : vector<2x8x8xf32>
    %cst_28 = arith.constant dense<0xFF800000> : vector<2x8xf32>
    %48 = vector.multi_reduction <maximumf>, %47, %cst_28 [2] : vector<2x8x8xf32> to vector<2x8xf32>
    %49 = vector.shape_cast %48 : vector<2x8xf32> to vector<2x8x1xf32>
    %50 = vector.broadcast %49 : vector<2x8x1xf32> to vector<2x8x8xf32>
    %51 = arith.subf %47, %50 : vector<2x8x8xf32>
    %52 = math.exp %51 : vector<2x8x8xf32>
    %cst_29 = arith.constant dense<0.000000e+00> : vector<2x8xf32>
    %53 = vector.multi_reduction <add>, %52, %cst_29 [2] : vector<2x8x8xf32> to vector<2x8xf32>
    %54 = vector.shape_cast %53 : vector<2x8xf32> to vector<2x8x1xf32>
    %55 = tpu.reciprocal %54 : vector<2x8x1xf32> -> vector<2x8x1xf32>
    %56 = vector.broadcast %55 : vector<2x8x1xf32> to vector<2x8x8xf32>
    %57 = arith.mulf %52, %56 : vector<2x8x8xf32>
    "tpu.trace_start"() <{level = 10 : i32, message = "bqk,bkd->bqd"}> : () -> ()
    %cst_30 = arith.constant dense<0.000000e+00> : vector<2x8x8xf32>
    %58 = tpu.matmul %57, %43, %cst_30 {dimension_numbers = #tpu.dot_dimension_numbers<[2], [1], [1], [2], [0, 0, 0, 1, 1, 2], [0], [0]>} : vector<2x8x8xf32>, vector<2x8x8xf32>, vector<2x8x8xf32> -> vector<2x8x8xf32>
    "tpu.trace_stop"() : () -> ()
    %c0_31 = arith.constant 0 : index
    %c0_32 = arith.constant 0 : index
    %c8 = arith.constant 8 : index
    %59 = vector.load %arg19[%c0_31, %c0_32, %c8] : memref<2x8x32xf32, #tpu.memory_space<vmem>>, vector<2x8x8xf32>
    tpu.vector_store %arg19[%c0_31, %c0_32, %c8], %58 {strides = array<i32>} : memref<2x8x32xf32, #tpu.memory_space<vmem>>, vector<2x8x8xf32>,
    %60 = vector.extract_strided_slice %19 {offsets = [0, 0, 16], sizes = [2, 8, 8], strides = [1, 1, 1]} : vector<2x8x32xf32> to vector<2x8x8xf32>
    %61 = vector.extract_strided_slice %20 {offsets = [0, 0, 16], sizes = [2, 8, 8], strides = [1, 1, 1]} : vector<2x8x32xf32> to vector<2x8x8xf32>
    %62 = vector.extract_strided_slice %21 {offsets = [0, 0, 16], sizes = [2, 8, 8], strides = [1, 1, 1]} : vector<2x8x32xf32> to vector<2x8x8xf32>
    "tpu.trace_start"() <{level = 10 : i32, message = "bqd,bkd->bqk"}> : () -> ()
    %cst_33 = arith.constant dense<0.000000e+00> : vector<2x8x8xf32>
    %63 = tpu.matmul %60, %61, %cst_33 {dimension_numbers = #tpu.dot_dimension_numbers<[2], [2], [1], [1], [0, 0, 0, 1, 1, 1], [0], [0]>} : vector<2x8x8xf32>, vector<2x8x8xf32>, vector<2x8x8xf32> -> vector<2x8x8xf32>
    "tpu.trace_stop"() : () -> ()
    %cst_34 = arith.constant 0.353553385 : f32
    %64 = vector.broadcast %cst_34 : f32 to vector<2x8x8xf32>
    %65 = arith.mulf %63, %64 : vector<2x8x8xf32>
    %66 = arith.addf %65, %3 : vector<2x8x8xf32>
    %cst_35 = arith.constant dense<0xFF800000> : vector<2x8xf32>
    %67 = vector.multi_reduction <maximumf>, %66, %cst_35 [2] : vector<2x8x8xf32> to vector<2x8xf32>
    %68 = vector.shape_cast %67 : vector<2x8xf32> to vector<2x8x1xf32>
    %69 = vector.broadcast %68 : vector<2x8x1xf32> to vector<2x8x8xf32>
    %70 = arith.subf %66, %69 : vector<2x8x8xf32>
    %71 = math.exp %70 : vector<2x8x8xf32>
    %cst_36 = arith.constant dense<0.000000e+00> : vector<2x8xf32>
    %72 = vector.multi_reduction <add>, %71, %cst_36 [2] : vector<2x8x8xf32> to vector<2x8xf32>
    %73 = vector.shape_cast %72 : vector<2x8xf32> to vector<2x8x1xf32>
    %74 = tpu.reciprocal %73 : vector<2x8x1xf32> -> vector<2x8x1xf32>
    %75 = vector.broadcast %74 : vector<2x8x1xf32> to vector<2x8x8xf32>
    %76 = arith.mulf %71, %75 : vector<2x8x8xf32>
    "tpu.trace_start"() <{level = 10 : i32, message = "bqk,bkd->bqd"}> : () -> ()
    %cst_37 = arith.constant dense<0.000000e+00> : vector<2x8x8xf32>
    %77 = tpu.matmul %76, %62, %cst_37 {dimension_numbers = #tpu.dot_dimension_numbers<[2], [1], [1], [2], [0, 0, 0, 1, 1, 2], [0], [0]>} : vector<2x8x8xf32>, vector<2x8x8xf32>, vector<2x8x8xf32> -> vector<2x8x8xf32>
    "tpu.trace_stop"() : () -> ()
    %c0_38 = arith.constant 0 : index
    %c0_39 = arith.constant 0 : index
    %c16 = arith.constant 16 : index
    %78 = vector.load %arg19[%c0_38, %c0_39, %c16] : memref<2x8x32xf32, #tpu.memory_space<vmem>>, vector<2x8x8xf32>
    tpu.vector_store %arg19[%c0_38, %c0_39, %c16], %77 {strides = array<i32>} : memref<2x8x32xf32, #tpu.memory_space<vmem>>, vector<2x8x8xf32>,
    %79 = vector.extract_strided_slice %19 {offsets = [0, 0, 24], sizes = [2, 8, 8], strides = [1, 1, 1]} : vector<2x8x32xf32> to vector<2x8x8xf32>
    %80 = vector.extract_strided_slice %20 {offsets = [0, 0, 24], sizes = [2, 8, 8], strides = [1, 1, 1]} : vector<2x8x32xf32> to vector<2x8x8xf32>
    %81 = vector.extract_strided_slice %21 {offsets = [0, 0, 24], sizes = [2, 8, 8], strides = [1, 1, 1]} : vector<2x8x32xf32> to vector<2x8x8xf32>
    "tpu.trace_start"() <{level = 10 : i32, message = "bqd,bkd->bqk"}> : () -> ()
    %cst_40 = arith.constant dense<0.000000e+00> : vector<2x8x8xf32>
    %82 = tpu.matmul %79, %80, %cst_40 {dimension_numbers = #tpu.dot_dimension_numbers<[2], [2], [1], [1], [0, 0, 0, 1, 1, 1], [0], [0]>} : vector<2x8x8xf32>, vector<2x8x8xf32>, vector<2x8x8xf32> -> vector<2x8x8xf32>
    "tpu.trace_stop"() : () -> ()
    %cst_41 = arith.constant 0.353553385 : f32
    %83 = vector.broadcast %cst_41 : f32 to vector<2x8x8xf32>
    %84 = arith.mulf %82, %83 : vector<2x8x8xf32>
    %85 = arith.addf %84, %3 : vector<2x8x8xf32>
    %cst_42 = arith.constant dense<0xFF800000> : vector<2x8xf32>
    %86 = vector.multi_reduction <maximumf>, %85, %cst_42 [2] : vector<2x8x8xf32> to vector<2x8xf32>
    %87 = vector.shape_cast %86 : vector<2x8xf32> to vector<2x8x1xf32>
    %88 = vector.broadcast %87 : vector<2x8x1xf32> to vector<2x8x8xf32>
    %89 = arith.subf %85, %88 : vector<2x8x8xf32>
    %90 = math.exp %89 : vector<2x8x8xf32>
    %cst_43 = arith.constant dense<0.000000e+00> : vector<2x8xf32>
    %91 = vector.multi_reduction <add>, %90, %cst_43 [2] : vector<2x8x8xf32> to vector<2x8xf32>
    %92 = vector.shape_cast %91 : vector<2x8xf32> to vector<2x8x1xf32>
    %93 = tpu.reciprocal %92 : vector<2x8x1xf32> -> vector<2x8x1xf32>
    %94 = vector.broadcast %93 : vector<2x8x1xf32> to vector<2x8x8xf32>
    %95 = arith.mulf %90, %94 : vector<2x8x8xf32>
    "tpu.trace_start"() <{level = 10 : i32, message = "bqk,bkd->bqd"}> : () -> ()
    %cst_44 = arith.constant dense<0.000000e+00> : vector<2x8x8xf32>
    %96 = tpu.matmul %95, %81, %cst_44 {dimension_numbers = #tpu.dot_dimension_numbers<[2], [1], [1], [2], [0, 0, 0, 1, 1, 2], [0], [0]>} : vector<2x8x8xf32>, vector<2x8x8xf32>, vector<2x8x8xf32> -> vector<2x8x8xf32>
    "tpu.trace_stop"() : () -> ()
    %c0_45 = arith.constant 0 : index
    %c0_46 = arith.constant 0 : index
    %c24 = arith.constant 24 : index
    %97 = vector.load %arg19[%c0_45, %c0_46, %c24] : memref<2x8x32xf32, #tpu.memory_space<vmem>>, vector<2x8x8xf32>
    tpu.vector_store %arg19[%c0_45, %c0_46, %c24], %96 {strides = array<i32>} : memref<2x8x32xf32, #tpu.memory_space<vmem>>, vector<2x8x8xf32>,
    %c0_47 = arith.constant 0 : index
    %c0_48 = arith.constant 0 : index
    %c0_49 = arith.constant 0 : index
    %98 = vector.load %arg19[%c0_47, %c0_48, %c0_49] : memref<2x8x32xf32, #tpu.memory_space<vmem>>, vector<2x8x32xf32>
    %99 = vector.shape_cast %98 : vector<2x8x32xf32> to vector<16x32xf32>
    %c0_50 = arith.constant 0 : index
    %c0_51 = arith.constant 0 : index
    %100 = vector.load %arg8[%c0_50, %c0_51] : memref<32x32xf32, #tpu.memory_space<vmem>>, vector<32x32xf32>
    %cst_52 = arith.constant dense<0.000000e+00> : vector<16x32xf32>
    %101 = tpu.matmul %99, %100, %cst_52 {dimension_numbers = #tpu.dot_dimension_numbers<[1], [0], [0], [1], [0, 0, 1, 1], [], []>} : vector<16x32xf32>, vector<32x32xf32>, vector<16x32xf32> -> vector<16x32xf32>
    %c0_53 = arith.constant 0 : index
    %c0_54 = arith.constant 0 : index
    %102 = vector.load %arg9[%c0_53, %c0_54] : memref<1x32xf32, #tpu.memory_space<vmem>>, vector<1x32xf32>
    %103 = vector.broadcast %102 : vector<1x32xf32> to vector<16x32xf32>
    %104 = arith.addf %101, %103 : vector<16x32xf32>
    %105 = arith.addf %0, %104 : vector<16x32xf32>
    %c0_55 = arith.constant 0 : index
    %c0_56 = arith.constant 0 : index
    %106 = vector.load %arg10[%c0_55, %c0_56] : memref<1x32xf32, #tpu.memory_space<vmem>>, vector<1x32xf32>
    %c0_57 = arith.constant 0 : index
    %c0_58 = arith.constant 0 : index
    %107 = vector.load %arg11[%c0_57, %c0_58] : memref<1x32xf32, #tpu.memory_space<vmem>>, vector<1x32xf32>
    %cst_59 = arith.constant dense<0.000000e+00> : vector<16xf32>
    %108 = vector.multi_reduction <add>, %105, %cst_59 [1] : vector<16x32xf32> to vector<16xf32>
    %109 = vector.shape_cast %108 : vector<16xf32> to vector<16x1xf32>
    %cst_60 = arith.constant 3.200000e+01 : f32
    %110 = vector.broadcast %cst_60 : f32 to vector<16x1xf32>
    %111 = arith.divf %109, %110 : vector<16x1xf32>
    %112 = vector.broadcast %111 : vector<16x1xf32> to vector<16x32xf32>
    %113 = arith.subf %105, %112 : vector<16x32xf32>
    %114 = arith.mulf %113, %113 : vector<16x32xf32>
    %cst_61 = arith.constant dense<0.000000e+00> : vector<16xf32>
    %115 = vector.multi_reduction <add>, %114, %cst_61 [1] : vector<16x32xf32> to vector<16xf32>
    %116 = vector.shape_cast %115 : vector<16xf32> to vector<16x1xf32>
    %cst_62 = arith.constant 3.200000e+01 : f32
    %117 = vector.broadcast %cst_62 : f32 to vector<16x1xf32>
    %118 = arith.divf %116, %117 : vector<16x1xf32>
    %119 = vector.broadcast %111 : vector<16x1xf32> to vector<16x32xf32>
    %120 = arith.subf %105, %119 : vector<16x32xf32>
    %cst_63 = arith.constant 9.99999996E-13 : f32
    %121 = vector.broadcast %cst_63 : f32 to vector<16x1xf32>
    %122 = arith.addf %118, %121 : vector<16x1xf32>
    %123 = math.rsqrt %122 : vector<16x1xf32>
    %124 = vector.broadcast %123 : vector<16x1xf32> to vector<16x32xf32>
    %125 = arith.mulf %120, %124 : vector<16x32xf32>
    %126 = vector.broadcast %106 : vector<1x32xf32> to vector<16x32xf32>
    %127 = arith.mulf %125, %126 : vector<16x32xf32>
    %128 = vector.broadcast %107 : vector<1x32xf32> to vector<16x32xf32>
    %129 = arith.addf %127, %128 : vector<16x32xf32>
    %c0_64 = arith.constant 0 : index
    %c0_65 = arith.constant 0 : index
    %130 = vector.load %arg12[%c0_64, %c0_65] : memref<32x64xf32, #tpu.memory_space<vmem>>, vector<32x64xf32>
    %cst_66 = arith.constant dense<0.000000e+00> : vector<16x64xf32>
    %131 = tpu.matmul %129, %130, %cst_66 {dimension_numbers = #tpu.dot_dimension_numbers<[1], [0], [0], [1], [0, 0, 1, 1], [], []>} : vector<16x32xf32>, vector<32x64xf32>, vector<16x64xf32> -> vector<16x64xf32>
    %c0_67 = arith.constant 0 : index
    %c0_68 = arith.constant 0 : index
    %132 = vector.load %arg13[%c0_67, %c0_68] : memref<1x64xf32, #tpu.memory_space<vmem>>, vector<1x64xf32>
    %133 = vector.broadcast %132 : vector<1x64xf32> to vector<16x64xf32>
    %134 = arith.addf %131, %133 : vector<16x64xf32>
    %cst_69 = arith.constant 5.000000e-01 : f32
    %135 = vector.broadcast %cst_69 : f32 to vector<16x64xf32>
    %136 = arith.mulf %135, %134 : vector<16x64xf32>
    %cst_70 = arith.constant 0.707106769 : f32
    %137 = vector.broadcast %cst_70 : f32 to vector<16x64xf32>
    %138 = arith.mulf %134, %137 : vector<16x64xf32>
    %139 = math.erf %138 : vector<16x64xf32>
    %cst_71 = arith.constant 1.000000e+00 : f32
    %140 = vector.broadcast %cst_71 : f32 to vector<16x64xf32>
    %141 = arith.addf %140, %139 : vector<16x64xf32>
    %142 = arith.mulf %136, %141 : vector<16x64xf32>
    %c0_72 = arith.constant 0 : index
    %c0_73 = arith.constant 0 : index
    %143 = vector.load %arg14[%c0_72, %c0_73] : memref<64x32xf32, #tpu.memory_space<vmem>>, vector<64x32xf32>
    %cst_74 = arith.constant dense<0.000000e+00> : vector<16x32xf32>
    %144 = tpu.matmul %142, %143, %cst_74 {dimension_numbers = #tpu.dot_dimension_numbers<[1], [0], [0], [1], [0, 0, 1, 1], [], []>} : vector<16x64xf32>, vector<64x32xf32>, vector<16x32xf32> -> vector<16x32xf32>
    %c0_75 = arith.constant 0 : index
    %c0_76 = arith.constant 0 : index
    %145 = vector.load %arg15[%c0_75, %c0_76] : memref<1x32xf32, #tpu.memory_space<vmem>>, vector<1x32xf32>
    %146 = vector.broadcast %145 : vector<1x32xf32> to vector<16x32xf32>
    %147 = arith.addf %144, %146 : vector<16x32xf32>
    %148 = arith.addf %129, %147 : vector<16x32xf32>
    %c0_77 = arith.constant 0 : index
    %c0_78 = arith.constant 0 : index
    %149 = vector.load %arg16[%c0_77, %c0_78] : memref<1x32xf32, #tpu.memory_space<vmem>>, vector<1x32xf32>
    %c0_79 = arith.constant 0 : index
    %c0_80 = arith.constant 0 : index
    %150 = vector.load %arg17[%c0_79, %c0_80] : memref<1x32xf32, #tpu.memory_space<vmem>>, vector<1x32xf32>
    %cst_81 = arith.constant dense<0.000000e+00> : vector<16xf32>
    %151 = vector.multi_reduction <add>, %148, %cst_81 [1] : vector<16x32xf32> to vector<16xf32>
    %152 = vector.shape_cast %151 : vector<16xf32> to vector<16x1xf32>
    %cst_82 = arith.constant 3.200000e+01 : f32
    %153 = vector.broadcast %cst_82 : f32 to vector<16x1xf32>
    %154 = arith.divf %152, %153 : vector<16x1xf32>
    %155 = vector.broadcast %154 : vector<16x1xf32> to vector<16x32xf32>
    %156 = arith.subf %148, %155 : vector<16x32xf32>
    %157 = arith.mulf %156, %156 : vector<16x32xf32>
    %cst_83 = arith.constant dense<0.000000e+00> : vector<16xf32>
    %158 = vector.multi_reduction <add>, %157, %cst_83 [1] : vector<16x32xf32> to vector<16xf32>
    %159 = vector.shape_cast %158 : vector<16xf32> to vector<16x1xf32>
    %cst_84 = arith.constant 3.200000e+01 : f32
    %160 = vector.broadcast %cst_84 : f32 to vector<16x1xf32>
    %161 = arith.divf %159, %160 : vector<16x1xf32>
    %162 = vector.broadcast %154 : vector<16x1xf32> to vector<16x32xf32>
    %163 = arith.subf %148, %162 : vector<16x32xf32>
    %cst_85 = arith.constant 9.99999996E-13 : f32
    %164 = vector.broadcast %cst_85 : f32 to vector<16x1xf32>
    %165 = arith.addf %161, %164 : vector<16x1xf32>
    %166 = math.rsqrt %165 : vector<16x1xf32>
    %167 = vector.broadcast %166 : vector<16x1xf32> to vector<16x32xf32>
    %168 = arith.mulf %163, %167 : vector<16x32xf32>
    %169 = vector.broadcast %149 : vector<1x32xf32> to vector<16x32xf32>
    %170 = arith.mulf %168, %169 : vector<16x32xf32>
    %171 = vector.broadcast %150 : vector<1x32xf32> to vector<16x32xf32>
    %172 = arith.addf %170, %171 : vector<16x32xf32>
    %c0_86 = arith.constant 0 : index
    %c0_87 = arith.constant 0 : index
    %173 = vector.load %arg18[%c0_86, %c0_87] : memref<16x32xf32, #tpu.memory_space<vmem>>, vector<16x32xf32>
    tpu.vector_store %arg18[%c0_86, %c0_87], %172 {strides = array<i32>} : memref<16x32xf32, #tpu.memory_space<vmem>>, vector<16x32xf32>,
    return
  }
}

</mosaic_0001>

<llo_original>
// kernel: tpu_custom_call.1
$region0: #{tpu_custom_call.1}
  #allocation0 [shape = 'u32[]', space=smem, size = 0x4, offset = 0x4, fixed_abs, tag = 'smem constant byte address 0x4 - core index']
  #allocation1 [shape = 'u32[144,128]{1,0:T(1,128)}', space=vmem, size = 0x12000, scoped, tag = 'internal scratch']
  #allocation2 [shape = 'f32[2,8,32]{2,1,0:T(8,128)}', space=vmem, size = 0x2000, scoped, tag = 'scratch operand']
  %s0 = inlined_call_operand.hbm [shape: f32[16,32], index: 0, kind: input, shape index: {}]
  %s1 = inlined_call_operand.vmem [shape: f32[2,1,8], index: 1, kind: input, shape index: {}]
  %s2 = inlined_call_operand.vmem [shape: f32[32,32], index: 2, kind: input, shape index: {}]
  %s3 = inlined_call_operand.vmem [shape: f32[1,32], index: 3, kind: input, shape index: {}]
  %s4 = inlined_call_operand.vmem [shape: f32[32,32], index: 4, kind: input, shape index: {}]
  %s5 = inlined_call_operand.vmem [shape: f32[1,32], index: 5, kind: input, shape index: {}]
  %s6 = inlined_call_operand.vmem [shape: f32[32,32], index: 6, kind: input, shape index: {}]
  %s7 = inlined_call_operand.vmem [shape: f32[1,32], index: 7, kind: input, shape index: {}]
  %s8 = inlined_call_operand.hbm [shape: f32[32,32], index: 8, kind: input, shape index: {}]
  %s9 = inlined_call_operand.vmem [shape: f32[1,32], index: 9, kind: input, shape index: {}]
  %s10 = inlined_call_operand.vmem [shape: f32[1,32], index: 10, kind: input, shape index: {}]
  %s11 = inlined_call_operand.vmem [shape: f32[1,32], index: 11, kind: input, shape index: {}]
  %s12 = inlined_call_operand.hbm [shape: f32[32,64], index: 12, kind: input, shape index: {}]
  %s13 = inlined_call_operand.vmem [shape: f32[1,64], index: 13, kind: input, shape index: {}]
  %s14 = inlined_call_operand.vmem [shape: f32[64,32], index: 14, kind: input, shape index: {}]
  %s15 = inlined_call_operand.vmem [shape: f32[1,32], index: 15, kind: input, shape index: {}]
  %s16 = inlined_call_operand.vmem [shape: f32[1,32], index: 16, kind: input, shape index: {}]
  %s17 = inlined_call_operand.vmem [shape: f32[1,32], index: 17, kind: input, shape index: {}]
  %s18 = inlined_call_operand.hbm [shape: f32[16,32], index: 18, kind: output, shape index: {}]
  %s19 = sld [smem:[#allocation0]]
  $region94: #{tpu_custom_call.1} parent=0
    _
  %s21 = ssub.s32 1, %s19
  %s22 = scalar_select 0, %s21, %s19
  $region1: #{tpu_custom_call.1} parent=0
    #allocation3 [shape = 'u8[8192]{0}', space=vmem, size = 0x2000, scoped, tag = 'input window, operand 0, single buffered']
    #allocation4 [shape = 's32[1]{0}', space=sflag, size = 0x4, scoped, tag = 'scoped memory for tpu_custom_call.1']
    #allocation5 [shape = 's32[1]{0}', space=sflag, size = 0x4, scoped, tag = 'scoped memory for tpu_custom_call.1']
    #allocation6 [shape = 'u8[16384]{0}', space=vmem, size = 0x4000, scoped, tag = 'input window, operand 8, single buffered']
    #allocation7 [shape = 's32[1]{0}', space=sflag, size = 0x4, scoped, tag = 'scoped memory for tpu_custom_call.1']
    #allocation8 [shape = 'u8[16384]{0}', space=vmem, size = 0x4000, scoped, tag = 'input window, operand 12, single buffered']
    #allocation9 [shape = 'u8[8192]{0}', space=vmem, size = 0x2000, scoped, tag = 'output window, operand 0, single buffered']
    %23 = vsyncpa [#allocation4], 0
    %24 = vsyncpa [#allocation7], 0
    %25 = vsyncpa [#allocation5], 0
    // Predicated region
    $region2: #{tpu_custom_call.1} parent=1 // pred_check
      _
    $region3: #{tpu_custom_call.1} parent=1 // pred_check_branch
      %27 = sbr.rel (0) target = $region5
    $region4: #{tpu_custom_call.1} parent=1 // pred_region
      %s29 = ssub.s32 256, 256
      %30 = vsyncadd [#allocation4], %s29
      %s31 = sshll.u32 [#allocation3], 4
      %s32 = int_to_ptr.vmem [resolvable:$true] %s31
      %37 = dma.hbm_to_vmem [thread:$0]  %s0, 256, %s32, [#allocation4], 128, 128, 8
    $region5: #{tpu_custom_call.1} parent=1 // pred_fallthru
      _
    // Predicated region
    $region6: #{tpu_custom_call.1} parent=1 // pred_check
      _
    $region7: #{tpu_custom_call.1} parent=1 // pred_check_branch
      %39 = sbr.rel (0) target = $region9
    $region8: #{tpu_custom_call.1} parent=1 // pred_region
      _
    $region9: #{tpu_custom_call.1} parent=1 // pred_fallthru
      _
    // Predicated region
    $region10: #{tpu_custom_call.1} parent=1 // pred_check
      _
    $region11: #{tpu_custom_call.1} parent=1 // pred_check_branch
      %41 = sbr.rel (0) target = $region13
    $region12: #{tpu_custom_call.1} parent=1 // pred_region
      _
    $region13: #{tpu_custom_call.1} parent=1 // pred_fallthru
      _
    // Predicated region
    $region14: #{tpu_custom_call.1} parent=1 // pred_check
      _
    $region15: #{tpu_custom_call.1} parent=1 // pred_check_branch
      %43 = sbr.rel (0) target = $region17
    $region16: #{tpu_custom_call.1} parent=1 // pred_region
      _
    $region17: #{tpu_custom_call.1} parent=1 // pred_fallthru
      _
    // Predicated region
    $region18: #{tpu_custom_call.1} parent=1 // pred_check
      _
    $region19: #{tpu_custom_call.1} parent=1 // pred_check_branch
      %45 = sbr.rel (0) target = $region21
    $region20: #{tpu_custom_call.1} parent=1 // pred_region
      _
    $region21: #{tpu_custom_call.1} parent=1 // pred_fallthru
      _
    // Predicated region
    $region22: #{tpu_custom_call.1} parent=1 // pred_check
      _
    $region23: #{tpu_custom_call.1} parent=1 // pred_check_branch
      %47 = sbr.rel (0) target = $region25
    $region24: #{tpu_custom_call.1} parent=1 // pred_region
      _
    $region25: #{tpu_custom_call.1} parent=1 // pred_fallthru
      _
    // Predicated region
    $region26: #{tpu_custom_call.1} parent=1 // pred_check
      _
    $region27: #{tpu_custom_call.1} parent=1 // pred_check_branch
      %49 = sbr.rel (0) target = $region29
    $region28: #{tpu_custom_call.1} parent=1 // pred_region
      _
    $region29: #{tpu_custom_call.1} parent=1 // pred_fallthru
      _
    // Predicated region
    $region30: #{tpu_custom_call.1} parent=1 // pred_check
      _
    $region31: #{tpu_custom_call.1} parent=1 // pred_check_branch
      %51 = sbr.rel (0) target = $region33
    $region32: #{tpu_custom_call.1} parent=1 // pred_region
      _
    $region33: #{tpu_custom_call.1} parent=1 // pred_fallthru
      _
    // Predicated region
    $region34: #{tpu_custom_call.1} parent=1 // pred_check
      _
    $region35: #{tpu_custom_call.1} parent=1 // pred_check_branch
      %53 = sbr.rel (0) target = $region37
    $region36: #{tpu_custom_call.1} parent=1 // pred_region
      %s55 = ssub.s32 512, 512
      %56 = vsyncadd [#allocation7], %s55
      %s57 = sshll.u32 [#allocation6], 4
      %s58 = int_to_ptr.vmem [resolvable:$true] %s57
      %63 = dma.hbm_to_vmem [thread:$0]  %s8, 512, %s58, [#allocation7], 128, 128, 8
    $region37: #{tpu_custom_call.1} parent=1 // pred_fallthru
      _
    // Predicated region
    $region38: #{tpu_custom_call.1} parent=1 // pred_check
      _
    $region39: #{tpu_custom_call.1} parent=1 // pred_check_branch
      %65 = sbr.rel (0) target = $region41
    $region40: #{tpu_custom_call.1} parent=1 // pred_region
      _
    $region41: #{tpu_custom_call.1} parent=1 // pred_fallthru
      _
    // Predicated region
    $region42: #{tpu_custom_call.1} parent=1 // pred_check
      _
    $region43: #{tpu_custom_call.1} parent=1 // pred_check_branch
      %67 = sbr.rel (0) target = $region45
    $region44: #{tpu_custom_call.1} parent=1 // pred_region
      _
    $region45: #{tpu_custom_call.1} parent=1 // pred_fallthru
      _
    // Predicated region
    $region46: #{tpu_custom_call.1} parent=1 // pred_check
      _
    $region47: #{tpu_custom_call.1} parent=1 // pred_check_branch
      %69 = sbr.rel (0) target = $region49
    $region48: #{tpu_custom_call.1} parent=1 // pred_region
      _
    $region49: #{tpu_custom_call.1} parent=1 // pred_fallthru
      _
    // Predicated region
    $region50: #{tpu_custom_call.1} parent=1 // pred_check
      _
    $region51: #{tpu_custom_call.1} parent=1 // pred_check_branch
      %71 = sbr.rel (0) target = $region53
    $region52: #{tpu_custom_call.1} parent=1 // pred_region
      %s73 = ssub.s32 512, 512
      %74 = vsyncadd [#allocation7], %s73
      %s75 = sshll.u32 [#allocation8], 4
      %s76 = int_to_ptr.vmem [resolvable:$true] %s75
      %81 = dma.hbm_to_vmem [thread:$0]  %s12, 512, %s76, [#allocation7], 128, 128, 8
    $region53: #{tpu_custom_call.1} parent=1 // pred_fallthru
      _
    // Predicated region
    $region54: #{tpu_custom_call.1} parent=1 // pred_check
      _
    $region55: #{tpu_custom_call.1} parent=1 // pred_check_branch
      %83 = sbr.rel (0) target = $region57
    $region56: #{tpu_custom_call.1} parent=1 // pred_region
      _
    $region57: #{tpu_custom_call.1} parent=1 // pred_fallthru
      _
    // Predicated region
    $region58: #{tpu_custom_call.1} parent=1 // pred_check
      _
    $region59: #{tpu_custom_call.1} parent=1 // pred_check_branch
      %85 = sbr.rel (0) target = $region61
    $region60: #{tpu_custom_call.1} parent=1 // pred_region
      _
    $region61: #{tpu_custom_call.1} parent=1 // pred_fallthru
      _
    // Predicated region
    $region62: #{tpu_custom_call.1} parent=1 // pred_check
      _
    $region63: #{tpu_custom_call.1} parent=1 // pred_check_branch
      %87 = sbr.rel (0) target = $region65
    $region64: #{tpu_custom_call.1} parent=1 // pred_region
      _
    $region65: #{tpu_custom_call.1} parent=1 // pred_fallthru
      _
    // Predicated region
    $region66: #{tpu_custom_call.1} parent=1 // pred_check
      _
    $region67: #{tpu_custom_call.1} parent=1 // pred_check_branch
      %89 = sbr.rel (0) target = $region69
    $region68: #{tpu_custom_call.1} parent=1 // pred_region
      _
    $region69: #{tpu_custom_call.1} parent=1 // pred_fallthru
      _
    // Predicated region
    $region70: #{tpu_custom_call.1} parent=1 // pred_check
      _
    $region71: #{tpu_custom_call.1} parent=1 // pred_check_branch
      %91 = sbr.rel (0) target = $region73
    $region72: #{tpu_custom_call.1} parent=1 // pred_region
      _
    $region73: #{tpu_custom_call.1} parent=1 // pred_fallthru
      _
    // Predicated region
    $region74: #{tpu_custom_call.1} parent=1 // pred_check
      _
    $region75: #{tpu_custom_call.1} parent=1 // pred_check_branch
      %93 = sbr.rel (0) target = $region77
    $region76: #{tpu_custom_call.1} parent=1 // pred_region
      %94 = dma.done [#allocation4], 256
    $region77: #{tpu_custom_call.1} parent=1 // pred_fallthru
      _
    // Predicated region
    $region78: #{tpu_custom_call.1} parent=1 // pred_check
      _
    $region79: #{tpu_custom_call.1} parent=1 // pred_check_branch
      %96 = sbr.rel (0) target = $region81
    $region80: #{tpu_custom_call.1} parent=1 // pred_region
      %97 = dma.done [#allocation7], 512
    $region81: #{tpu_custom_call.1} parent=1 // pred_fallthru
      _
    // Predicated region
    $region82: #{tpu_custom_call.1} parent=1 // pred_check
      _
    $region83: #{tpu_custom_call.1} parent=1 // pred_check_branch
      %99 = sbr.rel (0) target = $region85
    $region84: #{tpu_custom_call.1} parent=1 // pred_region
      %100 = dma.done [#allocation7], 512
    $region85: #{tpu_custom_call.1} parent=1 // pred_fallthru
      _
    %v101 = vld [vmem:[#allocation3] sm:$0xff]
    %v102 = vld [vmem:[#allocation3 + $0x8] sm:$0xff]
    %v103 = vld [vmem:[%s1] sm:$0x1]
    %v104 = vld [vmem:[%s1 + $0x1] sm:$0x1]
    %v107 = vlaneseq
    %v108 = vshrl.u32 %v107, 7
    %v109 = vsub.s32 0, %v108
    %v110 = vrot.slane %v103, %v109
    %v111 = vlaneseq
    %v112 = vshrl.u32 %v111, 7
    %v113 = vsub.s32 0, %v112
    %v114 = vrot.slane %v104, %v113
    %v117 = vld [vmem:[%s2] sm:$0xff]
    %v118 = vld [vmem:[%s2 + $0x8] sm:$0xff]
    %v119 = vld [vmem:[%s2 + $0x10] sm:$0xff]
    %v120 = vld [vmem:[%s2 + $0x18] sm:$0xff]
    %v121 = vld [vmem:[%s3] sm:$0x1]
    %v123 = vlaneseq
    %v124 = vshrl.u32 %v123, 7
    %v125 = vsub.s32 0, %v124
    %v126 = vrot.slane %v121, %v125
    %vm128 = vcmask 261120
    %v130 = vsel %vm128, %v101, 0
    %v133 = vsel %vm128, %v102, 0
    %135 = vmatprep.subr.mxu0 0.0
    %136 = vmatpush1.msra.mxu0 %v117
    %137 = vmatprep.subr.mxu0 0.0
    %138 = vmatpush1.msra.mxu0 %v118
    %139 = vmatprep.subr.mxu0 0.0
    %140 = vmatpush1.msra.mxu0 %v119
    %141 = vmatprep.subr.mxu0 0.0
    %142 = vmatpush1.msra.mxu0 %v120
    %143 = vmatprep.subr.mxu0 0.0
    %144 = vmatpush1.msra.mxu0 0.0
    %145 = vmatprep.subr.mxu0 0.0
    %146 = vmatpush1.msra.mxu0 0.0
    %147 = vmatprep.subr.mxu0 0.0
    %148 = vmatpush1.msra.mxu0 0.0
    %149 = vmatprep.subr.mxu0 0.0
    %150 = vmatpush1.msra.mxu0 0.0
    %151 = vmatprep.subr.mxu0 0.0
    %152 = vmatpush1.msra.mxu0 0.0
    %153 = vmatprep.subr.mxu0 0.0
    %154 = vmatpush1.msra.mxu0 0.0
    %155 = vmatprep.subr.mxu0 0.0
    %156 = vmatpush1.msra.mxu0 0.0
    %157 = vmatprep.subr.mxu0 0.0
    %158 = vmatpush1.msra.mxu0 0.0
    %159 = vmatprep.subr.mxu0 0.0
    %160 = vmatpush1.msra.mxu0 0.0
    %161 = vmatprep.subr.mxu0 0.0
    %162 = vmatpush1.msra.mxu0 0.0
    %163 = vmatprep.subr.mxu0 0.0
    %164 = vmatpush1.msra.mxu0 0.0
    %165 = vmatprep.subr.mxu0 0.0
    %166 = vmatpush1.msra.mxu0 0.0
    %167 = vmatprep.subr.mxu0 0.0
    %168 = vmatpush1.msra.mxu0 0.0
    %169 = vmatprep.subr.mxu0 0.0
    %170 = vmatpush1.msra.mxu0 0.0
    %171 = vmatprep.subr.mxu0 0.0
    %172 = vmatpush1.msra.mxu0 0.0
    %173 = vmatprep.subr.mxu0 0.0
    %174 = vmatpush1.msra.mxu0 0.0
    %175 = vmatprep.subr.mxu0 0.0
    %176 = vmatpush1.msra.mxu0 0.0
    %177 = vmatprep.subr.mxu0 0.0
    %178 = vmatpush1.msra.mxu0 0.0
    %179 = vmatprep.subr.mxu0 0.0
    %180 = vmatpush1.msra.mxu0 0.0
    %181 = vmatprep.subr.mxu0 0.0
    %182 = vmatpush1.msra.mxu0 0.0
    %183 = vmatprep.subr.mxu0 0.0
    %184 = vmatpush1.msra.mxu0 0.0
    %185 = vmatprep.subr.mxu0 0.0
    %186 = vmatpush1.msra.mxu0 0.0
    %187 = vmatprep.subr.mxu0 0.0
    %188 = vmatpush1.msra.mxu0 0.0
    %189 = vmatprep.subr.mxu0 0.0
    %190 = vmatpush1.msra.mxu0 0.0
    %191 = vmatprep.subr.mxu0 0.0
    %192 = vmatpush1.msra.mxu0 0.0
    %193 = vmatprep.subr.mxu0 0.0
    %194 = vmatpush1.msra.mxu0 0.0
    %195 = vmatprep.subr.mxu0 0.0
    %196 = vmatpush1.msra.mxu0 0.0
    %197 = vmatprep.subr.mxu0 0.0
    %198 = vmatpush1.msra.mxu0 0.0
    %199 = vmatprep.mubr.f32.mxu0 0.0
    %200 = vmatmul.mubr.f32.gmra.mrb[0].mxu0 %v130
    %v201 = vpop.f32.mrb[0].mxu0
    %v202 = vadd.f32 %v126, %v201
    %v203 = vpop.f32.mrb[0].mxu0
    %204 = vmatprep.mubr.f32.mxu0 0.0
    %205 = vmatmul.mubr.f32.gmra.mrb[0].mxu0 %v133
    %v206 = vpop.f32.mrb[0].mxu0
    %v207 = vadd.f32 %v126, %v206
    %v208 = vpop.f32.mrb[0].mxu0
    %209 = vdwg.mxu0
    %v210 = vld [vmem:[%s4] sm:$0xff]
    %v211 = vld [vmem:[%s4 + $0x8] sm:$0xff]
    %v212 = vld [vmem:[%s4 + $0x10] sm:$0xff]
    %v213 = vld [vmem:[%s4 + $0x18] sm:$0xff]
    %v214 = vld [vmem:[%s5] sm:$0x1]
    %v216 = vlaneseq
    %v217 = vshrl.u32 %v216, 7
    %v218 = vsub.s32 0, %v217
    %v219 = vrot.slane %v214, %v218
    %221 = vmatprep.subr.mxu0 0.0
    %222 = vmatpush1.msra.mxu0 %v210
    %223 = vmatprep.subr.mxu0 0.0
    %224 = vmatpush1.msra.mxu0 %v211
    %225 = vmatprep.subr.mxu0 0.0
    %226 = vmatpush1.msra.mxu0 %v212
    %227 = vmatprep.subr.mxu0 0.0
    %228 = vmatpush1.msra.mxu0 %v213
    %229 = vmatprep.subr.mxu0 0.0
    %230 = vmatpush1.msra.mxu0 0.0
    %231 = vmatprep.subr.mxu0 0.0
    %232 = vmatpush1.msra.mxu0 0.0
    %233 = vmatprep.subr.mxu0 0.0
    %234 = vmatpush1.msra.mxu0 0.0
    %235 = vmatprep.subr.mxu0 0.0
    %236 = vmatpush1.msra.mxu0 0.0
    %237 = vmatprep.subr.mxu0 0.0
    %238 = vmatpush1.msra.mxu0 0.0
    %239 = vmatprep.subr.mxu0 0.0
    %240 = vmatpush1.msra.mxu0 0.0
    %241 = vmatprep.subr.mxu0 0.0
    %242 = vmatpush1.msra.mxu0 0.0
    %243 = vmatprep.subr.mxu0 0.0
    %244 = vmatpush1.msra.mxu0 0.0
    %245 = vmatprep.subr.mxu0 0.0
    %246 = vmatpush1.msra.mxu0 0.0
    %247 = vmatprep.subr.mxu0 0.0
    %248 = vmatpush1.msra.mxu0 0.0
    %249 = vmatprep.subr.mxu0 0.0
    %250 = vmatpush1.msra.mxu0 0.0
    %251 = vmatprep.subr.mxu0 0.0
    %252 = vmatpush1.msra.mxu0 0.0
    %253 = vmatprep.subr.mxu0 0.0
    %254 = vmatpush1.msra.mxu0 0.0
    %255 = vmatprep.subr.mxu0 0.0
    %256 = vmatpush1.msra.mxu0 0.0
    %257 = vmatprep.subr.mxu0 0.0
    %258 = vmatpush1.msra.mxu0 0.0
    %259 = vmatprep.subr.mxu0 0.0
    %260 = vmatpush1.msra.mxu0 0.0
    %261 = vmatprep.subr.mxu0 0.0
    %262 = vmatpush1.msra.mxu0 0.0
    %263 = vmatprep.subr.mxu0 0.0
    %264 = vmatpush1.msra.mxu0 0.0
    %265 = vmatprep.subr.mxu0 0.0
    %266 = vmatpush1.msra.mxu0 0.0
    %267 = vmatprep.subr.mxu0 0.0
    %268 = vmatpush1.msra.mxu0 0.0
    %269 = vmatprep.subr.mxu0 0.0
    %270 = vmatpush1.msra.mxu0 0.0
    %271 = vmatprep.subr.mxu0 0.0
    %272 = vmatpush1.msra.mxu0 0.0
    %273 = vmatprep.subr.mxu0 0.0
    %274 = vmatpush1.msra.mxu0 0.0
    %275 = vmatprep.subr.mxu0 0.0
    %276 = vmatpush1.msra.mxu0 0.0
    %277 = vmatprep.subr.mxu0 0.0
    %278 = vmatpush1.msra.mxu0 0.0
    %279 = vmatprep.subr.mxu0 0.0
    %280 = vmatpush1.msra.mxu0 0.0
    %281 = vmatprep.subr.mxu0 0.0
    %282 = vmatpush1.msra.mxu0 0.0
    %283 = vmatprep.subr.mxu0 0.0
    %284 = vmatpush1.msra.mxu0 0.0
    %285 = vmatprep.mubr.f32.mxu0 0.0
    %286 = vmatmul.mubr.f32.gmra.mrb[0].mxu0 %v130
    %v287 = vpop.f32.mrb[0].mxu0
    %v288 = vadd.f32 %v219, %v287
    %v289 = vpop.f32.mrb[0].mxu0
    %290 = vmatprep.mubr.f32.mxu0 0.0
    %291 = vmatmul.mubr.f32.gmra.mrb[0].mxu0 %v133
    %v292 = vpop.f32.mrb[0].mxu0
    %v293 = vadd.f32 %v219, %v292
    %v294 = vpop.f32.mrb[0].mxu0
    %295 = vdwg.mxu0
    %v296 = vld [vmem:[%s6] sm:$0xff]
    %v297 = vld [vmem:[%s6 + $0x8] sm:$0xff]
    %v298 = vld [vmem:[%s6 + $0x10] sm:$0xff]
    %v299 = vld [vmem:[%s6 + $0x18] sm:$0xff]
    %v300 = vld [vmem:[%s7] sm:$0x1]
    %v302 = vlaneseq
    %v303 = vshrl.u32 %v302, 7
    %v304 = vsub.s32 0, %v303
    %v305 = vrot.slane %v300, %v304
    %307 = vmatprep.subr.mxu0 0.0
    %308 = vmatpush1.msra.mxu0 %v296
    %309 = vmatprep.subr.mxu0 0.0
    %310 = vmatpush1.msra.mxu0 %v297
    %311 = vmatprep.subr.mxu0 0.0
    %312 = vmatpush1.msra.mxu0 %v298
    %313 = vmatprep.subr.mxu0 0.0
    %314 = vmatpush1.msra.mxu0 %v299
    %315 = vmatprep.subr.mxu0 0.0
    %316 = vmatpush1.msra.mxu0 0.0
    %317 = vmatprep.subr.mxu0 0.0
    %318 = vmatpush1.msra.mxu0 0.0
    %319 = vmatprep.subr.mxu0 0.0
    %320 = vmatpush1.msra.mxu0 0.0
    %321 = vmatprep.subr.mxu0 0.0
    %322 = vmatpush1.msra.mxu0 0.0
    %323 = vmatprep.subr.mxu0 0.0
    %324 = vmatpush1.msra.mxu0 0.0
    %325 = vmatprep.subr.mxu0 0.0
    %326 = vmatpush1.msra.mxu0 0.0
    %327 = vmatprep.subr.mxu0 0.0
    %328 = vmatpush1.msra.mxu0 0.0
    %329 = vmatprep.subr.mxu0 0.0
    %330 = vmatpush1.msra.mxu0 0.0
    %331 = vmatprep.subr.mxu0 0.0
    %332 = vmatpush1.msra.mxu0 0.0
    %333 = vmatprep.subr.mxu0 0.0
    %334 = vmatpush1.msra.mxu0 0.0
    %335 = vmatprep.subr.mxu0 0.0
    %336 = vmatpush1.msra.mxu0 0.0
    %337 = vmatprep.subr.mxu0 0.0
    %338 = vmatpush1.msra.mxu0 0.0
    %339 = vmatprep.subr.mxu0 0.0
    %340 = vmatpush1.msra.mxu0 0.0
    %341 = vmatprep.subr.mxu0 0.0
    %342 = vmatpush1.msra.mxu0 0.0
    %343 = vmatprep.subr.mxu0 0.0
    %344 = vmatpush1.msra.mxu0 0.0
    %345 = vmatprep.subr.mxu0 0.0
    %346 = vmatpush1.msra.mxu0 0.0
    %347 = vmatprep.subr.mxu0 0.0
    %348 = vmatpush1.msra.mxu0 0.0
    %349 = vmatprep.subr.mxu0 0.0
    %350 = vmatpush1.msra.mxu0 0.0
    %351 = vmatprep.subr.mxu0 0.0
    %352 = vmatpush1.msra.mxu0 0.0
    %353 = vmatprep.subr.mxu0 0.0
    %354 = vmatpush1.msra.mxu0 0.0
    %355 = vmatprep.subr.mxu0 0.0
    %356 = vmatpush1.msra.mxu0 0.0
    %357 = vmatprep.subr.mxu0 0.0
    %358 = vmatpush1.msra.mxu0 0.0
    %359 = vmatprep.subr.mxu0 0.0
    %360 = vmatpush1.msra.mxu0 0.0
    %361 = vmatprep.subr.mxu0 0.0
    %362 = vmatpush1.msra.mxu0 0.0
    %363 = vmatprep.subr.mxu0 0.0
    %364 = vmatpush1.msra.mxu0 0.0
    %365 = vmatprep.subr.mxu0 0.0
    %366 = vmatpush1.msra.mxu0 0.0
    %367 = vmatprep.subr.mxu0 0.0
    %368 = vmatpush1.msra.mxu0 0.0
    %369 = vmatprep.subr.mxu0 0.0
    %370 = vmatpush1.msra.mxu0 0.0
    %371 = vmatprep.mubr.f32.mxu0 0.0
    %372 = vmatmul.mubr.f32.gmra.mrb[0].mxu0 %v130
    %v373 = vpop.f32.mrb[0].mxu0
    %v374 = vadd.f32 %v305, %v373
    %v375 = vpop.f32.mrb[0].mxu0
    %376 = vmatprep.mubr.f32.mxu0 0.0
    %377 = vmatmul.mubr.f32.gmra.mrb[0].mxu0 %v133
    %v378 = vpop.f32.mrb[0].mxu0
    %v379 = vadd.f32 %v305, %v378
    %v380 = vpop.f32.mrb[0].mxu0
    %381 = vdwg.mxu0
    %vm382 = vcmask 64512
    %v384 = vsel %vm382, %v202, 0
    %v387 = vsel %vm382, %v288, 0
    %389 = vmatprep.subr.mxu0 0.0
    %390 = vmatpush1.xpose.msra.mxu0 %v387
    %391 = vmatprep.subr.mxu0 0.0
    %392 = vmatpush1.xpose.msra.mxu0 0.0
    %393 = vmatprep.subr.mxu0 0.0
    %394 = vmatpush1.xpose.msra.mxu0 0.0
    %395 = vmatprep.subr.mxu0 0.0
    %396 = vmatpush1.xpose.msra.mxu0 0.0
    %397 = vmatprep.subr.mxu0 0.0
    %398 = vmatpush1.xpose.msra.mxu0 0.0
    %399 = vmatprep.subr.mxu0 0.0
    %400 = vmatpush1.xpose.msra.mxu0 0.0
    %401 = vmatprep.subr.mxu0 0.0
    %402 = vmatpush1.xpose.msra.mxu0 0.0
    %403 = vmatprep.subr.mxu0 0.0
    %404 = vmatpush1.xpose.msra.mxu0 0.0
    %405 = vmatprep.subr.mxu0 0.0
    %406 = vmatpush1.xpose.msra.mxu0 0.0
    %407 = vmatprep.subr.mxu0 0.0
    %408 = vmatpush1.xpose.msra.mxu0 0.0
    %409 = vmatprep.subr.mxu0 0.0
    %410 = vmatpush1.xpose.msra.mxu0 0.0
    %411 = vmatprep.subr.mxu0 0.0
    %412 = vmatpush1.xpose.msra.mxu0 0.0
    %413 = vmatprep.subr.mxu0 0.0
    %414 = vmatpush1.xpose.msra.mxu0 0.0
    %415 = vmatprep.subr.mxu0 0.0
    %416 = vmatpush1.xpose.msra.mxu0 0.0
    %417 = vmatprep.subr.mxu0 0.0
    %418 = vmatpush1.xpose.msra.mxu0 0.0
    %419 = vmatprep.subr.mxu0 0.0
    %420 = vmatpush1.xpose.msra.mxu0 0.0
    %421 = vmatprep.subr.mxu0 0.0
    %422 = vmatpush1.xpose.msra.mxu0 0.0
    %423 = vmatprep.subr.mxu0 0.0
    %424 = vmatpush1.xpose.msra.mxu0 0.0
    %425 = vmatprep.subr.mxu0 0.0
    %426 = vmatpush1.xpose.msra.mxu0 0.0
    %427 = vmatprep.subr.mxu0 0.0
    %428 = vmatpush1.xpose.msra.mxu0 0.0
    %429 = vmatprep.subr.mxu0 0.0
    %430 = vmatpush1.xpose.msra.mxu0 0.0
    %431 = vmatprep.subr.mxu0 0.0
    %432 = vmatpush1.xpose.msra.mxu0 0.0
    %433 = vmatprep.subr.mxu0 0.0
    %434 = vmatpush1.xpose.msra.mxu0 0.0
    %435 = vmatprep.subr.mxu0 0.0
    %436 = vmatpush1.xpose.msra.mxu0 0.0
    %437 = vmatprep.subr.mxu0 0.0
    %438 = vmatpush1.xpose.msra.mxu0 0.0
    %439 = vmatprep.subr.mxu0 0.0
    %440 = vmatpush1.xpose.msra.mxu0 0.0
    %441 = vmatprep.subr.mxu0 0.0
    %442 = vmatpush1.xpose.msra.mxu0 0.0
    %443 = vmatprep.subr.mxu0 0.0
    %444 = vmatpush1.xpose.msra.mxu0 0.0
    %445 = vmatprep.subr.mxu0 0.0
    %446 = vmatpush1.xpose.msra.mxu0 0.0
    %447 = vmatprep.subr.mxu0 0.0
    %448 = vmatpush1.xpose.msra.mxu0 0.0
    %449 = vmatprep.subr.mxu0 0.0
    %450 = vmatpush1.xpose.msra.mxu0 0.0
    %451 = vmatprep.subr.mxu0 0.0
    %452 = vmatpush1.xpose.msra.mxu0 0.0
    %453 = vmatprep.mubr.f32.mxu0 0.0
    %454 = vmatmul.mubr.f32.gmra.mrb[0].mxu0 %v384
    %v455 = vpop.f32.mrb[0].mxu0
    %v456 = vadd.f32 0.0, %v455
    %v457 = vpop.f32.mrb[0].mxu0
    %458 = vdwg.mxu0
    %v460 = vsel %vm382, %v207, 0
    %v463 = vsel %vm382, %v293, 0
    %465 = vmatprep.subr.mxu0 0.0
    %466 = vmatpush1.xpose.msra.mxu0 %v463
    %467 = vmatprep.subr.mxu0 0.0
    %468 = vmatpush1.xpose.msra.mxu0 0.0
    %469 = vmatprep.subr.mxu0 0.0
    %470 = vmatpush1.xpose.msra.mxu0 0.0
    %471 = vmatprep.subr.mxu0 0.0
    %472 = vmatpush1.xpose.msra.mxu0 0.0
    %473 = vmatprep.subr.mxu0 0.0
    %474 = vmatpush1.xpose.msra.mxu0 0.0
    %475 = vmatprep.subr.mxu0 0.0
    %476 = vmatpush1.xpose.msra.mxu0 0.0
    %477 = vmatprep.subr.mxu0 0.0
    %478 = vmatpush1.xpose.msra.mxu0 0.0
    %479 = vmatprep.subr.mxu0 0.0
    %480 = vmatpush1.xpose.msra.mxu0 0.0
    %481 = vmatprep.subr.mxu0 0.0
    %482 = vmatpush1.xpose.msra.mxu0 0.0
    %483 = vmatprep.subr.mxu0 0.0
    %484 = vmatpush1.xpose.msra.mxu0 0.0
    %485 = vmatprep.subr.mxu0 0.0
    %486 = vmatpush1.xpose.msra.mxu0 0.0
    %487 = vmatprep.subr.mxu0 0.0
    %488 = vmatpush1.xpose.msra.mxu0 0.0
    %489 = vmatprep.subr.mxu0 0.0
    %490 = vmatpush1.xpose.msra.mxu0 0.0
    %491 = vmatprep.subr.mxu0 0.0
    %492 = vmatpush1.xpose.msra.mxu0 0.0
    %493 = vmatprep.subr.mxu0 0.0
    %494 = vmatpush1.xpose.msra.mxu0 0.0
    %495 = vmatprep.subr.mxu0 0.0
    %496 = vmatpush1.xpose.msra.mxu0 0.0
    %497 = vmatprep.subr.mxu0 0.0
    %498 = vmatpush1.xpose.msra.mxu0 0.0
    %499 = vmatprep.subr.mxu0 0.0
    %500 = vmatpush1.xpose.msra.mxu0 0.0
    %501 = vmatprep.subr.mxu0 0.0
    %502 = vmatpush1.xpose.msra.mxu0 0.0
    %503 = vmatprep.subr.mxu0 0.0
    %504 = vmatpush1.xpose.msra.mxu0 0.0
    %505 = vmatprep.subr.mxu0 0.0
    %506 = vmatpush1.xpose.msra.mxu0 0.0
    %507 = vmatprep.subr.mxu0 0.0
    %508 = vmatpush1.xpose.msra.mxu0 0.0
    %509 = vmatprep.subr.mxu0 0.0
    %510 = vmatpush1.xpose.msra.mxu0 0.0
    %511 = vmatprep.subr.mxu0 0.0
    %512 = vmatpush1.xpose.msra.mxu0 0.0
    %513 = vmatprep.subr.mxu0 0.0
    %514 = vmatpush1.xpose.msra.mxu0 0.0
    %515 = vmatprep.subr.mxu0 0.0
    %516 = vmatpush1.xpose.msra.mxu0 0.0
    %517 = vmatprep.subr.mxu0 0.0
    %518 = vmatpush1.xpose.msra.mxu0 0.0
    %519 = vmatprep.subr.mxu0 0.0
    %520 = vmatpush1.xpose.msra.mxu0 0.0
    %521 = vmatprep.subr.mxu0 0.0
    %522 = vmatpush1.xpose.msra.mxu0 0.0
    %523 = vmatprep.subr.mxu0 0.0
    %524 = vmatpush1.xpose.msra.mxu0 0.0
    %525 = vmatprep.subr.mxu0 0.0
    %526 = vmatpush1.xpose.msra.mxu0 0.0
    %527 = vmatprep.subr.mxu0 0.0
    %528 = vmatpush1.xpose.msra.mxu0 0.0
    %529 = vmatprep.mubr.f32.mxu0 0.0
    %530 = vmatmul.mubr.f32.gmra.mrb[0].mxu0 %v460
    %v531 = vpop.f32.mrb[0].mxu0
    %v532 = vadd.f32 0.0, %v531
    %v533 = vpop.f32.mrb[0].mxu0
    %534 = vdwg.mxu0
    %v535 = vmul.f32 %v456, 0.35355338
    %v536 = vmul.f32 %v532, 0.35355338
    %v537 = vadd.f32 %v535, %v110
    %v538 = vadd.f32 %v536, %v114
    %v539 = vsel %vm382, %v537, -inf
    %540 = vmax.xlane.f32.xlu0 %v539
    %v541 = vpop.xlane.xlu0 %540
    %v542 = vsel %vm382, %v538, -inf
    %543 = vmax.xlane.f32.xlu0 %v542
    %v544 = vpop.xlane.xlu0 %543
    %v545 = vsub.f32 %v537, %v541
    %v546 = vsub.f32 %v538, %v544
    %v547 = vmul.f32 %v545, 1.442695
    %v548 = vpow.pop %v547
    %v549 = vmul.f32 %v546, 1.442695
    %v550 = vpow.pop %v549
    %v551 = vsel %vm382, %v548, 0.0
    %552 = vadd.xlane.f32.xlu0 %v551
    %v553 = vpop.xlane.xlu0 %552
    %v554 = vsel %vm382, %v550, 0.0
    %555 = vadd.xlane.f32.xlu0 %v554
    %v556 = vpop.xlane.xlu0 %555
    %v557 = vrcp.pop %v553
    %v558 = vrcp.pop %v556
    %v559 = vmul.f32 %v548, %v557
    %v560 = vmul.f32 %v550, %v558
    %v562 = vsel %vm382, %v559, 0
    %564 = vmatprep.subr.mxu0 0.0
    %565 = vmatpush1.msra.mxu0 %v374
    %566 = vmatprep.subr.mxu0 0.0
    %567 = vmatpush1.msra.mxu0 0.0
    %568 = vmatprep.subr.mxu0 0.0
    %569 = vmatpush1.msra.mxu0 0.0
    %570 = vmatprep.subr.mxu0 0.0
    %571 = vmatpush1.msra.mxu0 0.0
    %572 = vmatprep.subr.mxu0 0.0
    %573 = vmatpush1.msra.mxu0 0.0
    %574 = vmatprep.subr.mxu0 0.0
    %575 = vmatpush1.msra.mxu0 0.0
    %576 = vmatprep.subr.mxu0 0.0
    %577 = vmatpush1.msra.mxu0 0.0
    %578 = vmatprep.subr.mxu0 0.0
    %579 = vmatpush1.msra.mxu0 0.0
    %580 = vmatprep.subr.mxu0 0.0
    %581 = vmatpush1.msra.mxu0 0.0
    %582 = vmatprep.subr.mxu0 0.0
    %583 = vmatpush1.msra.mxu0 0.0
    %584 = vmatprep.subr.mxu0 0.0
    %585 = vmatpush1.msra.mxu0 0.0
    %586 = vmatprep.subr.mxu0 0.0
    %587 = vmatpush1.msra.mxu0 0.0
    %588 = vmatprep.subr.mxu0 0.0
    %589 = vmatpush1.msra.mxu0 0.0
    %590 = vmatprep.subr.mxu0 0.0
    %591 = vmatpush1.msra.mxu0 0.0
    %592 = vmatprep.subr.mxu0 0.0
    %593 = vmatpush1.msra.mxu0 0.0
    %594 = vmatprep.subr.mxu0 0.0
    %595 = vmatpush1.msra.mxu0 0.0
    %596 = vmatprep.subr.mxu0 0.0
    %597 = vmatpush1.msra.mxu0 0.0
    %598 = vmatprep.subr.mxu0 0.0
    %599 = vmatpush1.msra.mxu0 0.0
    %600 = vmatprep.subr.mxu0 0.0
    %601 = vmatpush1.msra.mxu0 0.0
    %602 = vmatprep.subr.mxu0 0.0
    %603 = vmatpush1.msra.mxu0 0.0
    %604 = vmatprep.subr.mxu0 0.0
    %605 = vmatpush1.msra.mxu0 0.0
    %606 = vmatprep.subr.mxu0 0.0
    %607 = vmatpush1.msra.mxu0 0.0
    %608 = vmatprep.subr.mxu0 0.0
    %609 = vmatpush1.msra.mxu0 0.0
    %610 = vmatprep.subr.mxu0 0.0
    %611 = vmatpush1.msra.mxu0 0.0
    %612 = vmatprep.subr.mxu0 0.0
    %613 = vmatpush1.msra.mxu0 0.0
    %614 = vmatprep.subr.mxu0 0.0
    %615 = vmatpush1.msra.mxu0 0.0
    %616 = vmatprep.subr.mxu0 0.0
    %617 = vmatpush1.msra.mxu0 0.0
    %618 = vmatprep.subr.mxu0 0.0
    %619 = vmatpush1.msra.mxu0 0.0
    %620 = vmatprep.subr.mxu0 0.0
    %621 = vmatpush1.msra.mxu0 0.0
    %622 = vmatprep.subr.mxu0 0.0
    %623 = vmatpush1.msra.mxu0 0.0
    %624 = vmatprep.subr.mxu0 0.0
    %625 = vmatpush1.msra.mxu0 0.0
    %626 = vmatprep.subr.mxu0 0.0
    %627 = vmatpush1.msra.mxu0 0.0
    %628 = vmatprep.mubr.f32.mxu0 0.0
    %629 = vmatmul.mubr.f32.gmra.mrb[0].mxu0 %v562
    %v630 = vpop.f32.mrb[0].mxu0
    %v631 = vadd.f32 0.0, %v630
    %v632 = vpop.f32.mrb[0].mxu0
    %633 = vdwg.mxu0
    %v635 = vsel %vm382, %v560, 0
    %637 = vmatprep.subr.mxu0 0.0
    %638 = vmatpush1.msra.mxu0 %v379
    %639 = vmatprep.subr.mxu0 0.0
    %640 = vmatpush1.msra.mxu0 0.0
    %641 = vmatprep.subr.mxu0 0.0
    %642 = vmatpush1.msra.mxu0 0.0
    %643 = vmatprep.subr.mxu0 0.0
    %644 = vmatpush1.msra.mxu0 0.0
    %645 = vmatprep.subr.mxu0 0.0
    %646 = vmatpush1.msra.mxu0 0.0
    %647 = vmatprep.subr.mxu0 0.0
    %648 = vmatpush1.msra.mxu0 0.0
    %649 = vmatprep.subr.mxu0 0.0
    %650 = vmatpush1.msra.mxu0 0.0
    %651 = vmatprep.subr.mxu0 0.0
    %652 = vmatpush1.msra.mxu0 0.0
    %653 = vmatprep.subr.mxu0 0.0
    %654 = vmatpush1.msra.mxu0 0.0
    %655 = vmatprep.subr.mxu0 0.0
    %656 = vmatpush1.msra.mxu0 0.0
    %657 = vmatprep.subr.mxu0 0.0
    %658 = vmatpush1.msra.mxu0 0.0
    %659 = vmatprep.subr.mxu0 0.0
    %660 = vmatpush1.msra.mxu0 0.0
    %661 = vmatprep.subr.mxu0 0.0
    %662 = vmatpush1.msra.mxu0 0.0
    %663 = vmatprep.subr.mxu0 0.0
    %664 = vmatpush1.msra.mxu0 0.0
    %665 = vmatprep.subr.mxu0 0.0
    %666 = vmatpush1.msra.mxu0 0.0
    %667 = vmatprep.subr.mxu0 0.0
    %668 = vmatpush1.msra.mxu0 0.0
    %669 = vmatprep.subr.mxu0 0.0
    %670 = vmatpush1.msra.mxu0 0.0
    %671 = vmatprep.subr.mxu0 0.0
    %672 = vmatpush1.msra.mxu0 0.0
    %673 = vmatprep.subr.mxu0 0.0
    %674 = vmatpush1.msra.mxu0 0.0
    %675 = vmatprep.subr.mxu0 0.0
    %676 = vmatpush1.msra.mxu0 0.0
    %677 = vmatprep.subr.mxu0 0.0
    %678 = vmatpush1.msra.mxu0 0.0
    %679 = vmatprep.subr.mxu0 0.0
    %680 = vmatpush1.msra.mxu0 0.0
    %681 = vmatprep.subr.mxu0 0.0
    %682 = vmatpush1.msra.mxu0 0.0
    %683 = vmatprep.subr.mxu0 0.0
    %684 = vmatpush1.msra.mxu0 0.0
    %685 = vmatprep.subr.mxu0 0.0
    %686 = vmatpush1.msra.mxu0 0.0
    %687 = vmatprep.subr.mxu0 0.0
    %688 = vmatpush1.msra.mxu0 0.0
    %689 = vmatprep.subr.mxu0 0.0
    %690 = vmatpush1.msra.mxu0 0.0
    %691 = vmatprep.subr.mxu0 0.0
    %692 = vmatpush1.msra.mxu0 0.0
    %693 = vmatprep.subr.mxu0 0.0
    %694 = vmatpush1.msra.mxu0 0.0
    %695 = vmatprep.subr.mxu0 0.0
    %696 = vmatpush1.msra.mxu0 0.0
    %697 = vmatprep.subr.mxu0 0.0
    %698 = vmatpush1.msra.mxu0 0.0
    %699 = vmatprep.subr.mxu0 0.0
    %700 = vmatpush1.msra.mxu0 0.0
    %701 = vmatprep.mubr.f32.mxu0 0.0
    %702 = vmatmul.mubr.f32.gmra.mrb[0].mxu0 %v635
    %v703 = vpop.f32.mrb[0].mxu0
    %v704 = vadd.f32 0.0, %v703
    %v705 = vpop.f32.mrb[0].mxu0
    %706 = vdwg.mxu0
    %707 = vst.msk [vmem:[#allocation2] sm:$0xff] %vm382, %v631
    %708 = vst.msk [vmem:[#allocation2 + $0x8] sm:$0xff] %vm382, %v704
    %709 = vrot.lane.b32.xlu0 %v202, 120
    %v710 = vpop.permute.xlu0 %709
    %711 = vrot.lane.b32.xlu0 %v288, 120
    %v712 = vpop.permute.xlu0 %711
    %v713 = vsel %vm382, %v710, 0
    %v715 = vsel %vm382, %v712, 0
    %717 = vmatprep.subr.mxu0 0.0
    %718 = vmatpush1.xpose.msra.mxu0 %v715
    %719 = vmatprep.subr.mxu0 0.0
    %720 = vmatpush1.xpose.msra.mxu0 0.0
    %721 = vmatprep.subr.mxu0 0.0
    %722 = vmatpush1.xpose.msra.mxu0 0.0
    %723 = vmatprep.subr.mxu0 0.0
    %724 = vmatpush1.xpose.msra.mxu0 0.0
    %725 = vmatprep.subr.mxu0 0.0
    %726 = vmatpush1.xpose.msra.mxu0 0.0
    %727 = vmatprep.subr.mxu0 0.0
    %728 = vmatpush1.xpose.msra.mxu0 0.0
    %729 = vmatprep.subr.mxu0 0.0
    %730 = vmatpush1.xpose.msra.mxu0 0.0
    %731 = vmatprep.subr.mxu0 0.0
    %732 = vmatpush1.xpose.msra.mxu0 0.0
    %733 = vmatprep.subr.mxu0 0.0
    %734 = vmatpush1.xpose.msra.mxu0 0.0
    %735 = vmatprep.subr.mxu0 0.0
    %736 = vmatpush1.xpose.msra.mxu0 0.0
    %737 = vmatprep.subr.mxu0 0.0
    %738 = vmatpush1.xpose.msra.mxu0 0.0
    %739 = vmatprep.subr.mxu0 0.0
    %740 = vmatpush1.xpose.msra.mxu0 0.0
    %741 = vmatprep.subr.mxu0 0.0
    %742 = vmatpush1.xpose.msra.mxu0 0.0
    %743 = vmatprep.subr.mxu0 0.0
    %744 = vmatpush1.xpose.msra.mxu0 0.0
    %745 = vmatprep.subr.mxu0 0.0
    %746 = vmatpush1.xpose.msra.mxu0 0.0
    %747 = vmatprep.subr.mxu0 0.0
    %748 = vmatpush1.xpose.msra.mxu0 0.0
    %749 = vmatprep.subr.mxu0 0.0
    %750 = vmatpush1.xpose.msra.mxu0 0.0
    %751 = vmatprep.subr.mxu0 0.0
    %752 = vmatpush1.xpose.msra.mxu0 0.0
    %753 = vmatprep.subr.mxu0 0.0
    %754 = vmatpush1.xpose.msra.mxu0 0.0
    %755 = vmatprep.subr.mxu0 0.0
    %756 = vmatpush1.xpose.msra.mxu0 0.0
    %757 = vmatprep.subr.mxu0 0.0
    %758 = vmatpush1.xpose.msra.mxu0 0.0
    %759 = vmatprep.subr.mxu0 0.0
    %760 = vmatpush1.xpose.msra.mxu0 0.0
    %761 = vmatprep.subr.mxu0 0.0
    %762 = vmatpush1.xpose.msra.mxu0 0.0
    %763 = vmatprep.subr.mxu0 0.0
    %764 = vmatpush1.xpose.msra.mxu0 0.0
    %765 = vmatprep.subr.mxu0 0.0
    %766 = vmatpush1.xpose.msra.mxu0 0.0
    %767 = vmatprep.subr.mxu0 0.0
    %768 = vmatpush1.xpose.msra.mxu0 0.0
    %769 = vmatprep.subr.mxu0 0.0
    %770 = vmatpush1.xpose.msra.mxu0 0.0
    %771 = vmatprep.subr.mxu0 0.0
    %772 = vmatpush1.xpose.msra.mxu0 0.0
    %773 = vmatprep.subr.mxu0 0.0
    %774 = vmatpush1.xpose.msra.mxu0 0.0
    %775 = vmatprep.subr.mxu0 0.0
    %776 = vmatpush1.xpose.msra.mxu0 0.0
    %777 = vmatprep.subr.mxu0 0.0
    %778 = vmatpush1.xpose.msra.mxu0 0.0
    %779 = vmatprep.subr.mxu0 0.0
    %780 = vmatpush1.xpose.msra.mxu0 0.0
    %781 = vmatprep.mubr.f32.mxu0 0.0
    %782 = vmatmul.mubr.f32.gmra.mrb[0].mxu0 %v713
    %v783 = vpop.f32.mrb[0].mxu0
    %v784 = vadd.f32 0.0, %v783
    %v785 = vpop.f32.mrb[0].mxu0
    %786 = vdwg.mxu0
    %787 = vrot.lane.b32.xlu0 %v207, 120
    %v788 = vpop.permute.xlu0 %787
    %789 = vrot.lane.b32.xlu0 %v293, 120
    %v790 = vpop.permute.xlu0 %789
    %v791 = vsel %vm382, %v788, 0
    %v793 = vsel %vm382, %v790, 0
    %795 = vmatprep.subr.mxu0 0.0
    %796 = vmatpush1.xpose.msra.mxu0 %v793
    %797 = vmatprep.subr.mxu0 0.0
    %798 = vmatpush1.xpose.msra.mxu0 0.0
    %799 = vmatprep.subr.mxu0 0.0
    %800 = vmatpush1.xpose.msra.mxu0 0.0
    %801 = vmatprep.subr.mxu0 0.0
    %802 = vmatpush1.xpose.msra.mxu0 0.0
    %803 = vmatprep.subr.mxu0 0.0
    %804 = vmatpush1.xpose.msra.mxu0 0.0
    %805 = vmatprep.subr.mxu0 0.0
    %806 = vmatpush1.xpose.msra.mxu0 0.0
    %807 = vmatprep.subr.mxu0 0.0
    %808 = vmatpush1.xpose.msra.mxu0 0.0
    %809 = vmatprep.subr.mxu0 0.0
    %810 = vmatpush1.xpose.msra.mxu0 0.0
    %811 = vmatprep.subr.mxu0 0.0
    %812 = vmatpush1.xpose.msra.mxu0 0.0
    %813 = vmatprep.subr.mxu0 0.0
    %814 = vmatpush1.xpose.msra.mxu0 0.0
    %815 = vmatprep.subr.mxu0 0.0
    %816 = vmatpush1.xpose.msra.mxu0 0.0
    %817 = vmatprep.subr.mxu0 0.0
    %818 = vmatpush1.xpose.msra.mxu0 0.0
    %819 = vmatprep.subr.mxu0 0.0
    %820 = vmatpush1.xpose.msra.mxu0 0.0
    %821 = vmatprep.subr.mxu0 0.0
    %822 = vmatpush1.xpose.msra.mxu0 0.0
    %823 = vmatprep.subr.mxu0 0.0
    %824 = vmatpush1.xpose.msra.mxu0 0.0
    %825 = vmatprep.subr.mxu0 0.0
    %826 = vmatpush1.xpose.msra.mxu0 0.0
    %827 = vmatprep.subr.mxu0 0.0
    %828 = vmatpush1.xpose.msra.mxu0 0.0
    %829 = vmatprep.subr.mxu0 0.0
    %830 = vmatpush1.xpose.msra.mxu0 0.0
    %831 = vmatprep.subr.mxu0 0.0
    %832 = vmatpush1.xpose.msra.mxu0 0.0
    %833 = vmatprep.subr.mxu0 0.0
    %834 = vmatpush1.xpose.msra.mxu0 0.0
    %835 = vmatprep.subr.mxu0 0.0
    %836 = vmatpush1.xpose.msra.mxu0 0.0
    %837 = vmatprep.subr.mxu0 0.0
    %838 = vmatpush1.xpose.msra.mxu0 0.0
    %839 = vmatprep.subr.mxu0 0.0
    %840 = vmatpush1.xpose.msra.mxu0 0.0
    %841 = vmatprep.subr.mxu0 0.0
    %842 = vmatpush1.xpose.msra.mxu0 0.0
    %843 = vmatprep.subr.mxu0 0.0
    %844 = vmatpush1.xpose.msra.mxu0 0.0
    %845 = vmatprep.subr.mxu0 0.0
    %846 = vmatpush1.xpose.msra.mxu0 0.0
    %847 = vmatprep.subr.mxu0 0.0
    %848 = vmatpush1.xpose.msra.mxu0 0.0
    %849 = vmatprep.subr.mxu0 0.0
    %850 = vmatpush1.xpose.msra.mxu0 0.0
    %851 = vmatprep.subr.mxu0 0.0
    %852 = vmatpush1.xpose.msra.mxu0 0.0
    %853 = vmatprep.subr.mxu0 0.0
    %854 = vmatpush1.xpose.msra.mxu0 0.0
    %855 = vmatprep.subr.mxu0 0.0
    %856 = vmatpush1.xpose.msra.mxu0 0.0
    %857 = vmatprep.subr.mxu0 0.0
    %858 = vmatpush1.xpose.msra.mxu0 0.0
    %859 = vmatprep.mubr.f32.mxu0 0.0
    %860 = vmatmul.mubr.f32.gmra.mrb[0].mxu0 %v791
    %v861 = vpop.f32.mrb[0].mxu0
    %v862 = vadd.f32 0.0, %v861
    %v863 = vpop.f32.mrb[0].mxu0
    %864 = vdwg.mxu0
    %v865 = vmul.f32 %v784, 0.35355338
    %v866 = vmul.f32 %v862, 0.35355338
    %v867 = vadd.f32 %v865, %v110
    %v868 = vadd.f32 %v866, %v114
    %v869 = vsel %vm382, %v867, -inf
    %870 = vmax.xlane.f32.xlu0 %v869
    %v871 = vpop.xlane.xlu0 %870
    %v872 = vsel %vm382, %v868, -inf
    %873 = vmax.xlane.f32.xlu0 %v872
    %v874 = vpop.xlane.xlu0 %873
    %v875 = vsub.f32 %v867, %v871
    %v876 = vsub.f32 %v868, %v874
    %v877 = vmul.f32 %v875, 1.442695
    %v878 = vpow.pop %v877
    %v879 = vmul.f32 %v876, 1.442695
    %v880 = vpow.pop %v879
    %v881 = vsel %vm382, %v878, 0.0
    %882 = vadd.xlane.f32.xlu0 %v881
    %v883 = vpop.xlane.xlu0 %882
    %v884 = vsel %vm382, %v880, 0.0
    %885 = vadd.xlane.f32.xlu0 %v884
    %v886 = vpop.xlane.xlu0 %885
    %v887 = vrcp.pop %v883
    %v888 = vrcp.pop %v886
    %v889 = vmul.f32 %v878, %v887
    %v890 = vmul.f32 %v880, %v888
    %892 = vrot.lane.b32.xlu0 %v374, 120
    %v893 = vpop.permute.xlu0 %892
    %v896 = vsel %vm382, %v889, 0
    %898 = vmatprep.subr.mxu0 0.0
    %899 = vmatpush1.msra.mxu0 %v893
    %900 = vmatprep.subr.mxu0 0.0
    %901 = vmatpush1.msra.mxu0 0.0
    %902 = vmatprep.subr.mxu0 0.0
    %903 = vmatpush1.msra.mxu0 0.0
    %904 = vmatprep.subr.mxu0 0.0
    %905 = vmatpush1.msra.mxu0 0.0
    %906 = vmatprep.subr.mxu0 0.0
    %907 = vmatpush1.msra.mxu0 0.0
    %908 = vmatprep.subr.mxu0 0.0
    %909 = vmatpush1.msra.mxu0 0.0
    %910 = vmatprep.subr.mxu0 0.0
    %911 = vmatpush1.msra.mxu0 0.0
    %912 = vmatprep.subr.mxu0 0.0
    %913 = vmatpush1.msra.mxu0 0.0
    %914 = vmatprep.subr.mxu0 0.0
    %915 = vmatpush1.msra.mxu0 0.0
    %916 = vmatprep.subr.mxu0 0.0
    %917 = vmatpush1.msra.mxu0 0.0
    %918 = vmatprep.subr.mxu0 0.0
    %919 = vmatpush1.msra.mxu0 0.0
    %920 = vmatprep.subr.mxu0 0.0
    %921 = vmatpush1.msra.mxu0 0.0
    %922 = vmatprep.subr.mxu0 0.0
    %923 = vmatpush1.msra.mxu0 0.0
    %924 = vmatprep.subr.mxu0 0.0
    %925 = vmatpush1.msra.mxu0 0.0
    %926 = vmatprep.subr.mxu0 0.0
    %927 = vmatpush1.msra.mxu0 0.0
    %928 = vmatprep.subr.mxu0 0.0
    %929 = vmatpush1.msra.mxu0 0.0
    %930 = vmatprep.subr.mxu0 0.0
    %931 = vmatpush1.msra.mxu0 0.0
    %932 = vmatprep.subr.mxu0 0.0
    %933 = vmatpush1.msra.mxu0 0.0
    %934 = vmatprep.subr.mxu0 0.0
    %935 = vmatpush1.msra.mxu0 0.0
    %936 = vmatprep.subr.mxu0 0.0
    %937 = vmatpush1.msra.mxu0 0.0
    %938 = vmatprep.subr.mxu0 0.0
    %939 = vmatpush1.msra.mxu0 0.0
    %940 = vmatprep.subr.mxu0 0.0
    %941 = vmatpush1.msra.mxu0 0.0
    %942 = vmatprep.subr.mxu0 0.0
    %943 = vmatpush1.msra.mxu0 0.0
    %944 = vmatprep.subr.mxu0 0.0
    %945 = vmatpush1.msra.mxu0 0.0
    %946 = vmatprep.subr.mxu0 0.0
    %947 = vmatpush1.msra.mxu0 0.0
    %948 = vmatprep.subr.mxu0 0.0
    %949 = vmatpush1.msra.mxu0 0.0
    %950 = vmatprep.subr.mxu0 0.0
    %951 = vmatpush1.msra.mxu0 0.0
    %952 = vmatprep.subr.mxu0 0.0
    %953 = vmatpush1.msra.mxu0 0.0
    %954 = vmatprep.subr.mxu0 0.0
    %955 = vmatpush1.msra.mxu0 0.0
    %956 = vmatprep.subr.mxu0 0.0
    %957 = vmatpush1.msra.mxu0 0.0
    %958 = vmatprep.subr.mxu0 0.0
    %959 = vmatpush1.msra.mxu0 0.0
    %960 = vmatprep.subr.mxu0 0.0
    %961 = vmatpush1.msra.mxu0 0.0
    %962 = vmatprep.mubr.f32.mxu0 0.0
    %963 = vmatmul.mubr.f32.gmra.mrb[0].mxu0 %v896
    %v964 = vpop.f32.mrb[0].mxu0
    %v965 = vadd.f32 0.0, %v964
    %v966 = vpop.f32.mrb[0].mxu0
    %967 = vdwg.mxu0
    %969 = vrot.lane.b32.xlu0 %v379, 120
    %v970 = vpop.permute.xlu0 %969
    %v973 = vsel %vm382, %v890, 0
    %975 = vmatprep.subr.mxu0 0.0
    %976 = vmatpush1.msra.mxu0 %v970
    %977 = vmatprep.subr.mxu0 0.0
    %978 = vmatpush1.msra.mxu0 0.0
    %979 = vmatprep.subr.mxu0 0.0
    %980 = vmatpush1.msra.mxu0 0.0
    %981 = vmatprep.subr.mxu0 0.0
    %982 = vmatpush1.msra.mxu0 0.0
    %983 = vmatprep.subr.mxu0 0.0
    %984 = vmatpush1.msra.mxu0 0.0
    %985 = vmatprep.subr.mxu0 0.0
    %986 = vmatpush1.msra.mxu0 0.0
    %987 = vmatprep.subr.mxu0 0.0
    %988 = vmatpush1.msra.mxu0 0.0
    %989 = vmatprep.subr.mxu0 0.0
    %990 = vmatpush1.msra.mxu0 0.0
    %991 = vmatprep.subr.mxu0 0.0
    %992 = vmatpush1.msra.mxu0 0.0
    %993 = vmatprep.subr.mxu0 0.0
    %994 = vmatpush1.msra.mxu0 0.0
    %995 = vmatprep.subr.mxu0 0.0
    %996 = vmatpush1.msra.mxu0 0.0
    %997 = vmatprep.subr.mxu0 0.0
    %998 = vmatpush1.msra.mxu0 0.0
    %999 = vmatprep.subr.mxu0 0.0
    %1000 = vmatpush1.msra.mxu0 0.0
    %1001 = vmatprep.subr.mxu0 0.0
    %1002 = vmatpush1.msra.mxu0 0.0
    %1003 = vmatprep.subr.mxu0 0.0
    %1004 = vmatpush1.msra.mxu0 0.0
    %1005 = vmatprep.subr.mxu0 0.0
    %1006 = vmatpush1.msra.mxu0 0.0
    %1007 = vmatprep.subr.mxu0 0.0
    %1008 = vmatpush1.msra.mxu0 0.0
    %1009 = vmatprep.subr.mxu0 0.0
    %1010 = vmatpush1.msra.mxu0 0.0
    %1011 = vmatprep.subr.mxu0 0.0
    %1012 = vmatpush1.msra.mxu0 0.0
    %1013 = vmatprep.subr.mxu0 0.0
    %1014 = vmatpush1.msra.mxu0 0.0
    %1015 = vmatprep.subr.mxu0 0.0
    %1016 = vmatpush1.msra.mxu0 0.0
    %1017 = vmatprep.subr.mxu0 0.0
    %1018 = vmatpush1.msra.mxu0 0.0
    %1019 = vmatprep.subr.mxu0 0.0
    %1020 = vmatpush1.msra.mxu0 0.0
    %1021 = vmatprep.subr.mxu0 0.0
    %1022 = vmatpush1.msra.mxu0 0.0
    %1023 = vmatprep.subr.mxu0 0.0
    %1024 = vmatpush1.msra.mxu0 0.0
    %1025 = vmatprep.subr.mxu0 0.0
    %1026 = vmatpush1.msra.mxu0 0.0
    %1027 = vmatprep.subr.mxu0 0.0
    %1028 = vmatpush1.msra.mxu0 0.0
    %1029 = vmatprep.subr.mxu0 0.0
    %1030 = vmatpush1.msra.mxu0 0.0
    %1031 = vmatprep.subr.mxu0 0.0
    %1032 = vmatpush1.msra.mxu0 0.0
    %1033 = vmatprep.subr.mxu0 0.0
    %1034 = vmatpush1.msra.mxu0 0.0
    %1035 = vmatprep.subr.mxu0 0.0
    %1036 = vmatpush1.msra.mxu0 0.0
    %1037 = vmatprep.subr.mxu0 0.0
    %1038 = vmatpush1.msra.mxu0 0.0
    %1039 = vmatprep.mubr.f32.mxu0 0.0
    %1040 = vmatmul.mubr.f32.gmra.mrb[0].mxu0 %v973
    %v1041 = vpop.f32.mrb[0].mxu0
    %v1042 = vadd.f32 0.0, %v1041
    %v1043 = vpop.f32.mrb[0].mxu0
    %1044 = vdwg.mxu0
    %1047 = vrot.lane.b32.xlu0 %v965, 8
    %v1048 = vpop.permute.xlu0 %1047
    %1049 = vrot.lane.b32.xlu0 %v1042, 8
    %v1050 = vpop.permute.xlu0 %1049
    %vm1053 = vcmask 130112
    %1054 = vst.msk [vmem:[#allocation2] sm:$0xff] %vm1053, %v1048
    %1055 = vst.msk [vmem:[#allocation2 + $0x8] sm:$0xff] %vm1053, %v1050
    %1056 = vrot.lane.b32.xlu0 %v202, 112
    %v1057 = vpop.permute.xlu0 %1056
    %1058 = vrot.lane.b32.xlu0 %v288, 112
    %v1059 = vpop.permute.xlu0 %1058
    %v1060 = vsel %vm382, %v1057, 0
    %v1062 = vsel %vm382, %v1059, 0
    %1064 = vmatprep.subr.mxu0 0.0
    %1065 = vmatpush1.xpose.msra.mxu0 %v1062
    %1066 = vmatprep.subr.mxu0 0.0
    %1067 = vmatpush1.xpose.msra.mxu0 0.0
    %1068 = vmatprep.subr.mxu0 0.0
    %1069 = vmatpush1.xpose.msra.mxu0 0.0
    %1070 = vmatprep.subr.mxu0 0.0
    %1071 = vmatpush1.xpose.msra.mxu0 0.0
    %1072 = vmatprep.subr.mxu0 0.0
    %1073 = vmatpush1.xpose.msra.mxu0 0.0
    %1074 = vmatprep.subr.mxu0 0.0
    %1075 = vmatpush1.xpose.msra.mxu0 0.0
    %1076 = vmatprep.subr.mxu0 0.0
    %1077 = vmatpush1.xpose.msra.mxu0 0.0
    %1078 = vmatprep.subr.mxu0 0.0
    %1079 = vmatpush1.xpose.msra.mxu0 0.0
    %1080 = vmatprep.subr.mxu0 0.0
    %1081 = vmatpush1.xpose.msra.mxu0 0.0
    %1082 = vmatprep.subr.mxu0 0.0
    %1083 = vmatpush1.xpose.msra.mxu0 0.0
    %1084 = vmatprep.subr.mxu0 0.0
    %1085 = vmatpush1.xpose.msra.mxu0 0.0
    %1086 = vmatprep.subr.mxu0 0.0
    %1087 = vmatpush1.xpose.msra.mxu0 0.0
    %1088 = vmatprep.subr.mxu0 0.0
    %1089 = vmatpush1.xpose.msra.mxu0 0.0
    %1090 = vmatprep.subr.mxu0 0.0
    %1091 = vmatpush1.xpose.msra.mxu0 0.0
    %1092 = vmatprep.subr.mxu0 0.0
    %1093 = vmatpush1.xpose.msra.mxu0 0.0
    %1094 = vmatprep.subr.mxu0 0.0
    %1095 = vmatpush1.xpose.msra.mxu0 0.0
    %1096 = vmatprep.subr.mxu0 0.0
    %1097 = vmatpush1.xpose.msra.mxu0 0.0
    %1098 = vmatprep.subr.mxu0 0.0
    %1099 = vmatpush1.xpose.msra.mxu0 0.0
    %1100 = vmatprep.subr.mxu0 0.0
    %1101 = vmatpush1.xpose.msra.mxu0 0.0
    %1102 = vmatprep.subr.mxu0 0.0
    %1103 = vmatpush1.xpose.msra.mxu0 0.0
    %1104 = vmatprep.subr.mxu0 0.0
    %1105 = vmatpush1.xpose.msra.mxu0 0.0
    %1106 = vmatprep.subr.mxu0 0.0
    %1107 = vmatpush1.xpose.msra.mxu0 0.0
    %1108 = vmatprep.subr.mxu0 0.0
    %1109 = vmatpush1.xpose.msra.mxu0 0.0
    %1110 = vmatprep.subr.mxu0 0.0
    %1111 = vmatpush1.xpose.msra.mxu0 0.0
    %1112 = vmatprep.subr.mxu0 0.0
    %1113 = vmatpush1.xpose.msra.mxu0 0.0
    %1114 = vmatprep.subr.mxu0 0.0
    %1115 = vmatpush1.xpose.msra.mxu0 0.0
    %1116 = vmatprep.subr.mxu0 0.0
    %1117 = vmatpush1.xpose.msra.mxu0 0.0
    %1118 = vmatprep.subr.mxu0 0.0
    %1119 = vmatpush1.xpose.msra.mxu0 0.0
    %1120 = vmatprep.subr.mxu0 0.0
    %1121 = vmatpush1.xpose.msra.mxu0 0.0
    %1122 = vmatprep.subr.mxu0 0.0
    %1123 = vmatpush1.xpose.msra.mxu0 0.0
    %1124 = vmatprep.subr.mxu0 0.0
    %1125 = vmatpush1.xpose.msra.mxu0 0.0
    %1126 = vmatprep.subr.mxu0 0.0
    %1127 = vmatpush1.xpose.msra.mxu0 0.0
    %1128 = vmatprep.mubr.f32.mxu0 0.0
    %1129 = vmatmul.mubr.f32.gmra.mrb[0].mxu0 %v1060
    %v1130 = vpop.f32.mrb[0].mxu0
    %v1131 = vadd.f32 0.0, %v1130
    %v1132 = vpop.f32.mrb[0].mxu0
    %1133 = vdwg.mxu0
    %1134 = vrot.lane.b32.xlu0 %v207, 112
    %v1135 = vpop.permute.xlu0 %1134
    %1136 = vrot.lane.b32.xlu0 %v293, 112
    %v1137 = vpop.permute.xlu0 %1136
    %v1138 = vsel %vm382, %v1135, 0
    %v1140 = vsel %vm382, %v1137, 0
    %1142 = vmatprep.subr.mxu0 0.0
    %1143 = vmatpush1.xpose.msra.mxu0 %v1140
    %1144 = vmatprep.subr.mxu0 0.0
    %1145 = vmatpush1.xpose.msra.mxu0 0.0
    %1146 = vmatprep.subr.mxu0 0.0
    %1147 = vmatpush1.xpose.msra.mxu0 0.0
    %1148 = vmatprep.subr.mxu0 0.0
    %1149 = vmatpush1.xpose.msra.mxu0 0.0
    %1150 = vmatprep.subr.mxu0 0.0
    %1151 = vmatpush1.xpose.msra.mxu0 0.0
    %1152 = vmatprep.subr.mxu0 0.0
    %1153 = vmatpush1.xpose.msra.mxu0 0.0
    %1154 = vmatprep.subr.mxu0 0.0
    %1155 = vmatpush1.xpose.msra.mxu0 0.0
    %1156 = vmatprep.subr.mxu0 0.0
    %1157 = vmatpush1.xpose.msra.mxu0 0.0
    %1158 = vmatprep.subr.mxu0 0.0
    %1159 = vmatpush1.xpose.msra.mxu0 0.0
    %1160 = vmatprep.subr.mxu0 0.0
    %1161 = vmatpush1.xpose.msra.mxu0 0.0
    %1162 = vmatprep.subr.mxu0 0.0
    %1163 = vmatpush1.xpose.msra.mxu0 0.0
    %1164 = vmatprep.subr.mxu0 0.0
    %1165 = vmatpush1.xpose.msra.mxu0 0.0
    %1166 = vmatprep.subr.mxu0 0.0
    %1167 = vmatpush1.xpose.msra.mxu0 0.0
    %1168 = vmatprep.subr.mxu0 0.0
    %1169 = vmatpush1.xpose.msra.mxu0 0.0
    %1170 = vmatprep.subr.mxu0 0.0
    %1171 = vmatpush1.xpose.msra.mxu0 0.0
    %1172 = vmatprep.subr.mxu0 0.0
    %1173 = vmatpush1.xpose.msra.mxu0 0.0
    %1174 = vmatprep.subr.mxu0 0.0
    %1175 = vmatpush1.xpose.msra.mxu0 0.0
    %1176 = vmatprep.subr.mxu0 0.0
    %1177 = vmatpush1.xpose.msra.mxu0 0.0
    %1178 = vmatprep.subr.mxu0 0.0
    %1179 = vmatpush1.xpose.msra.mxu0 0.0
    %1180 = vmatprep.subr.mxu0 0.0
    %1181 = vmatpush1.xpose.msra.mxu0 0.0
    %1182 = vmatprep.subr.mxu0 0.0
    %1183 = vmatpush1.xpose.msra.mxu0 0.0
    %1184 = vmatprep.subr.mxu0 0.0
    %1185 = vmatpush1.xpose.msra.mxu0 0.0
    %1186 = vmatprep.subr.mxu0 0.0
    %1187 = vmatpush1.xpose.msra.mxu0 0.0
    %1188 = vmatprep.subr.mxu0 0.0
    %1189 = vmatpush1.xpose.msra.mxu0 0.0
    %1190 = vmatprep.subr.mxu0 0.0
    %1191 = vmatpush1.xpose.msra.mxu0 0.0
    %1192 = vmatprep.subr.mxu0 0.0
    %1193 = vmatpush1.xpose.msra.mxu0 0.0
    %1194 = vmatprep.subr.mxu0 0.0
    %1195 = vmatpush1.xpose.msra.mxu0 0.0
    %1196 = vmatprep.subr.mxu0 0.0
    %1197 = vmatpush1.xpose.msra.mxu0 0.0
    %1198 = vmatprep.subr.mxu0 0.0
    %1199 = vmatpush1.xpose.msra.mxu0 0.0
    %1200 = vmatprep.subr.mxu0 0.0
    %1201 = vmatpush1.xpose.msra.mxu0 0.0
    %1202 = vmatprep.subr.mxu0 0.0
    %1203 = vmatpush1.xpose.msra.mxu0 0.0
    %1204 = vmatprep.subr.mxu0 0.0
    %1205 = vmatpush1.xpose.msra.mxu0 0.0
    %1206 = vmatprep.mubr.f32.mxu0 0.0
    %1207 = vmatmul.mubr.f32.gmra.mrb[0].mxu0 %v1138
    %v1208 = vpop.f32.mrb[0].mxu0
    %v1209 = vadd.f32 0.0, %v1208
    %v1210 = vpop.f32.mrb[0].mxu0
    %1211 = vdwg.mxu0
    %v1212 = vmul.f32 %v1131, 0.35355338
    %v1213 = vmul.f32 %v1209, 0.35355338
    %v1214 = vadd.f32 %v1212, %v110
    %v1215 = vadd.f32 %v1213, %v114
    %v1216 = vsel %vm382, %v1214, -inf
    %1217 = vmax.xlane.f32.xlu0 %v1216
    %v1218 = vpop.xlane.xlu0 %1217
    %v1219 = vsel %vm382, %v1215, -inf
    %1220 = vmax.xlane.f32.xlu0 %v1219
    %v1221 = vpop.xlane.xlu0 %1220
    %v1222 = vsub.f32 %v1214, %v1218
    %v1223 = vsub.f32 %v1215, %v1221
    %v1224 = vmul.f32 %v1222, 1.442695
    %v1225 = vpow.pop %v1224
    %v1226 = vmul.f32 %v1223, 1.442695
    %v1227 = vpow.pop %v1226
    %v1228 = vsel %vm382, %v1225, 0.0
    %1229 = vadd.xlane.f32.xlu0 %v1228
    %v1230 = vpop.xlane.xlu0 %1229
    %v1231 = vsel %vm382, %v1227, 0.0
    %1232 = vadd.xlane.f32.xlu0 %v1231
    %v1233 = vpop.xlane.xlu0 %1232
    %v1234 = vrcp.pop %v1230
    %v1235 = vrcp.pop %v1233
    %v1236 = vmul.f32 %v1225, %v1234
    %v1237 = vmul.f32 %v1227, %v1235
    %1238 = vrot.lane.b32.xlu0 %v374, 112
    %v1239 = vpop.permute.xlu0 %1238
    %v1242 = vsel %vm382, %v1236, 0
    %1244 = vmatprep.subr.mxu0 0.0
    %1245 = vmatpush1.msra.mxu0 %v1239
    %1246 = vmatprep.subr.mxu0 0.0
    %1247 = vmatpush1.msra.mxu0 0.0
    %1248 = vmatprep.subr.mxu0 0.0
    %1249 = vmatpush1.msra.mxu0 0.0
    %1250 = vmatprep.subr.mxu0 0.0
    %1251 = vmatpush1.msra.mxu0 0.0
    %1252 = vmatprep.subr.mxu0 0.0
    %1253 = vmatpush1.msra.mxu0 0.0
    %1254 = vmatprep.subr.mxu0 0.0
    %1255 = vmatpush1.msra.mxu0 0.0
    %1256 = vmatprep.subr.mxu0 0.0
    %1257 = vmatpush1.msra.mxu0 0.0
    %1258 = vmatprep.subr.mxu0 0.0
    %1259 = vmatpush1.msra.mxu0 0.0
    %1260 = vmatprep.subr.mxu0 0.0
    %1261 = vmatpush1.msra.mxu0 0.0
    %1262 = vmatprep.subr.mxu0 0.0
    %1263 = vmatpush1.msra.mxu0 0.0
    %1264 = vmatprep.subr.mxu0 0.0
    %1265 = vmatpush1.msra.mxu0 0.0
    %1266 = vmatprep.subr.mxu0 0.0
    %1267 = vmatpush1.msra.mxu0 0.0
    %1268 = vmatprep.subr.mxu0 0.0
    %1269 = vmatpush1.msra.mxu0 0.0
    %1270 = vmatprep.subr.mxu0 0.0
    %1271 = vmatpush1.msra.mxu0 0.0
    %1272 = vmatprep.subr.mxu0 0.0
    %1273 = vmatpush1.msra.mxu0 0.0
    %1274 = vmatprep.subr.mxu0 0.0
    %1275 = vmatpush1.msra.mxu0 0.0
    %1276 = vmatprep.subr.mxu0 0.0
    %1277 = vmatpush1.msra.mxu0 0.0
    %1278 = vmatprep.subr.mxu0 0.0
    %1279 = vmatpush1.msra.mxu0 0.0
    %1280 = vmatprep.subr.mxu0 0.0
    %1281 = vmatpush1.msra.mxu0 0.0
    %1282 = vmatprep.subr.mxu0 0.0
    %1283 = vmatpush1.msra.mxu0 0.0
    %1284 = vmatprep.subr.mxu0 0.0
    %1285 = vmatpush1.msra.mxu0 0.0
    %1286 = vmatprep.subr.mxu0 0.0
    %1287 = vmatpush1.msra.mxu0 0.0
    %1288 = vmatprep.subr.mxu0 0.0
    %1289 = vmatpush1.msra.mxu0 0.0
    %1290 = vmatprep.subr.mxu0 0.0
    %1291 = vmatpush1.msra.mxu0 0.0
    %1292 = vmatprep.subr.mxu0 0.0
    %1293 = vmatpush1.msra.mxu0 0.0
    %1294 = vmatprep.subr.mxu0 0.0
    %1295 = vmatpush1.msra.mxu0 0.0
    %1296 = vmatprep.subr.mxu0 0.0
    %1297 = vmatpush1.msra.mxu0 0.0
    %1298 = vmatprep.subr.mxu0 0.0
    %1299 = vmatpush1.msra.mxu0 0.0
    %1300 = vmatprep.subr.mxu0 0.0
    %1301 = vmatpush1.msra.mxu0 0.0
    %1302 = vmatprep.subr.mxu0 0.0
    %1303 = vmatpush1.msra.mxu0 0.0
    %1304 = vmatprep.subr.mxu0 0.0
    %1305 = vmatpush1.msra.mxu0 0.0
    %1306 = vmatprep.subr.mxu0 0.0
    %1307 = vmatpush1.msra.mxu0 0.0
    %1308 = vmatprep.mubr.f32.mxu0 0.0
    %1309 = vmatmul.mubr.f32.gmra.mrb[0].mxu0 %v1242
    %v1310 = vpop.f32.mrb[0].mxu0
    %v1311 = vadd.f32 0.0, %v1310
    %v1312 = vpop.f32.mrb[0].mxu0
    %1313 = vdwg.mxu0
    %1314 = vrot.lane.b32.xlu0 %v379, 112
    %v1315 = vpop.permute.xlu0 %1314
    %v1318 = vsel %vm382, %v1237, 0
    %1320 = vmatprep.subr.mxu0 0.0
    %1321 = vmatpush1.msra.mxu0 %v1315
    %1322 = vmatprep.subr.mxu0 0.0
    %1323 = vmatpush1.msra.mxu0 0.0
    %1324 = vmatprep.subr.mxu0 0.0
    %1325 = vmatpush1.msra.mxu0 0.0
    %1326 = vmatprep.subr.mxu0 0.0
    %1327 = vmatpush1.msra.mxu0 0.0
    %1328 = vmatprep.subr.mxu0 0.0
    %1329 = vmatpush1.msra.mxu0 0.0
    %1330 = vmatprep.subr.mxu0 0.0
    %1331 = vmatpush1.msra.mxu0 0.0
    %1332 = vmatprep.subr.mxu0 0.0
    %1333 = vmatpush1.msra.mxu0 0.0
    %1334 = vmatprep.subr.mxu0 0.0
    %1335 = vmatpush1.msra.mxu0 0.0
    %1336 = vmatprep.subr.mxu0 0.0
    %1337 = vmatpush1.msra.mxu0 0.0
    %1338 = vmatprep.subr.mxu0 0.0
    %1339 = vmatpush1.msra.mxu0 0.0
    %1340 = vmatprep.subr.mxu0 0.0
    %1341 = vmatpush1.msra.mxu0 0.0
    %1342 = vmatprep.subr.mxu0 0.0
    %1343 = vmatpush1.msra.mxu0 0.0
    %1344 = vmatprep.subr.mxu0 0.0
    %1345 = vmatpush1.msra.mxu0 0.0
    %1346 = vmatprep.subr.mxu0 0.0
    %1347 = vmatpush1.msra.mxu0 0.0
    %1348 = vmatprep.subr.mxu0 0.0
    %1349 = vmatpush1.msra.mxu0 0.0
    %1350 = vmatprep.subr.mxu0 0.0
    %1351 = vmatpush1.msra.mxu0 0.0
    %1352 = vmatprep.subr.mxu0 0.0
    %1353 = vmatpush1.msra.mxu0 0.0
    %1354 = vmatprep.subr.mxu0 0.0
    %1355 = vmatpush1.msra.mxu0 0.0
    %1356 = vmatprep.subr.mxu0 0.0
    %1357 = vmatpush1.msra.mxu0 0.0
    %1358 = vmatprep.subr.mxu0 0.0
    %1359 = vmatpush1.msra.mxu0 0.0
    %1360 = vmatprep.subr.mxu0 0.0
    %1361 = vmatpush1.msra.mxu0 0.0
    %1362 = vmatprep.subr.mxu0 0.0
    %1363 = vmatpush1.msra.mxu0 0.0
    %1364 = vmatprep.subr.mxu0 0.0
    %1365 = vmatpush1.msra.mxu0 0.0
    %1366 = vmatprep.subr.mxu0 0.0
    %1367 = vmatpush1.msra.mxu0 0.0
    %1368 = vmatprep.subr.mxu0 0.0
    %1369 = vmatpush1.msra.mxu0 0.0
    %1370 = vmatprep.subr.mxu0 0.0
    %1371 = vmatpush1.msra.mxu0 0.0
    %1372 = vmatprep.subr.mxu0 0.0
    %1373 = vmatpush1.msra.mxu0 0.0
    %1374 = vmatprep.subr.mxu0 0.0
    %1375 = vmatpush1.msra.mxu0 0.0
    %1376 = vmatprep.subr.mxu0 0.0
    %1377 = vmatpush1.msra.mxu0 0.0
    %1378 = vmatprep.subr.mxu0 0.0
    %1379 = vmatpush1.msra.mxu0 0.0
    %1380 = vmatprep.subr.mxu0 0.0
    %1381 = vmatpush1.msra.mxu0 0.0
    %1382 = vmatprep.subr.mxu0 0.0
    %1383 = vmatpush1.msra.mxu0 0.0
    %1384 = vmatprep.mubr.f32.mxu0 0.0
    %1385 = vmatmul.mubr.f32.gmra.mrb[0].mxu0 %v1318
    %v1386 = vpop.f32.mrb[0].mxu0
    %v1387 = vadd.f32 0.0, %v1386
    %v1388 = vpop.f32.mrb[0].mxu0
    %1389 = vdwg.mxu0
    %1392 = vrot.lane.b32.xlu0 %v1311, 16
    %v1393 = vpop.permute.xlu0 %1392
    %1394 = vrot.lane.b32.xlu0 %v1387, 16
    %v1395 = vpop.permute.xlu0 %1394
    %vm1398 = vcmask 195712
    %1399 = vst.msk [vmem:[#allocation2] sm:$0xff] %vm1398, %v1393
    %1400 = vst.msk [vmem:[#allocation2 + $0x8] sm:$0xff] %vm1398, %v1395
    %1401 = vrot.lane.b32.xlu0 %v202, 104
    %v1402 = vpop.permute.xlu0 %1401
    %1403 = vrot.lane.b32.xlu0 %v288, 104
    %v1404 = vpop.permute.xlu0 %1403
    %v1405 = vsel %vm382, %v1402, 0
    %v1407 = vsel %vm382, %v1404, 0
    %1409 = vmatprep.subr.mxu0 0.0
    %1410 = vmatpush1.xpose.msra.mxu0 %v1407
    %1411 = vmatprep.subr.mxu0 0.0
    %1412 = vmatpush1.xpose.msra.mxu0 0.0
    %1413 = vmatprep.subr.mxu0 0.0
    %1414 = vmatpush1.xpose.msra.mxu0 0.0
    %1415 = vmatprep.subr.mxu0 0.0
    %1416 = vmatpush1.xpose.msra.mxu0 0.0
    %1417 = vmatprep.subr.mxu0 0.0
    %1418 = vmatpush1.xpose.msra.mxu0 0.0
    %1419 = vmatprep.subr.mxu0 0.0
    %1420 = vmatpush1.xpose.msra.mxu0 0.0
    %1421 = vmatprep.subr.mxu0 0.0
    %1422 = vmatpush1.xpose.msra.mxu0 0.0
    %1423 = vmatprep.subr.mxu0 0.0
    %1424 = vmatpush1.xpose.msra.mxu0 0.0
    %1425 = vmatprep.subr.mxu0 0.0
    %1426 = vmatpush1.xpose.msra.mxu0 0.0
    %1427 = vmatprep.subr.mxu0 0.0
    %1428 = vmatpush1.xpose.msra.mxu0 0.0
    %1429 = vmatprep.subr.mxu0 0.0
    %1430 = vmatpush1.xpose.msra.mxu0 0.0
    %1431 = vmatprep.subr.mxu0 0.0
    %1432 = vmatpush1.xpose.msra.mxu0 0.0
    %1433 = vmatprep.subr.mxu0 0.0
    %1434 = vmatpush1.xpose.msra.mxu0 0.0
    %1435 = vmatprep.subr.mxu0 0.0
    %1436 = vmatpush1.xpose.msra.mxu0 0.0
    %1437 = vmatprep.subr.mxu0 0.0
    %1438 = vmatpush1.xpose.msra.mxu0 0.0
    %1439 = vmatprep.subr.mxu0 0.0
    %1440 = vmatpush1.xpose.msra.mxu0 0.0
    %1441 = vmatprep.subr.mxu0 0.0
    %1442 = vmatpush1.xpose.msra.mxu0 0.0
    %1443 = vmatprep.subr.mxu0 0.0
    %1444 = vmatpush1.xpose.msra.mxu0 0.0
    %1445 = vmatprep.subr.mxu0 0.0
    %1446 = vmatpush1.xpose.msra.mxu0 0.0
    %1447 = vmatprep.subr.mxu0 0.0
    %1448 = vmatpush1.xpose.msra.mxu0 0.0
    %1449 = vmatprep.subr.mxu0 0.0
    %1450 = vmatpush1.xpose.msra.mxu0 0.0
    %1451 = vmatprep.subr.mxu0 0.0
    %1452 = vmatpush1.xpose.msra.mxu0 0.0
    %1453 = vmatprep.subr.mxu0 0.0
    %1454 = vmatpush1.xpose.msra.mxu0 0.0
    %1455 = vmatprep.subr.mxu0 0.0
    %1456 = vmatpush1.xpose.msra.mxu0 0.0
    %1457 = vmatprep.subr.mxu0 0.0
    %1458 = vmatpush1.xpose.msra.mxu0 0.0
    %1459 = vmatprep.subr.mxu0 0.0
    %1460 = vmatpush1.xpose.msra.mxu0 0.0
    %1461 = vmatprep.subr.mxu0 0.0
    %1462 = vmatpush1.xpose.msra.mxu0 0.0
    %1463 = vmatprep.subr.mxu0 0.0
    %1464 = vmatpush1.xpose.msra.mxu0 0.0
    %1465 = vmatprep.subr.mxu0 0.0
    %1466 = vmatpush1.xpose.msra.mxu0 0.0
    %1467 = vmatprep.subr.mxu0 0.0
    %1468 = vmatpush1.xpose.msra.mxu0 0.0
    %1469 = vmatprep.subr.mxu0 0.0
    %1470 = vmatpush1.xpose.msra.mxu0 0.0
    %1471 = vmatprep.subr.mxu0 0.0
    %1472 = vmatpush1.xpose.msra.mxu0 0.0
    %1473 = vmatprep.mubr.f32.mxu0 0.0
    %1474 = vmatmul.mubr.f32.gmra.mrb[0].mxu0 %v1405
    %v1475 = vpop.f32.mrb[0].mxu0
    %v1476 = vadd.f32 0.0, %v1475
    %v1477 = vpop.f32.mrb[0].mxu0
    %1478 = vdwg.mxu0
    %1479 = vrot.lane.b32.xlu0 %v207, 104
    %v1480 = vpop.permute.xlu0 %1479
    %1481 = vrot.lane.b32.xlu0 %v293, 104
    %v1482 = vpop.permute.xlu0 %1481
    %v1483 = vsel %vm382, %v1480, 0
    %v1485 = vsel %vm382, %v1482, 0
    %1487 = vmatprep.subr.mxu0 0.0
    %1488 = vmatpush1.xpose.msra.mxu0 %v1485
    %1489 = vmatprep.subr.mxu0 0.0
    %1490 = vmatpush1.xpose.msra.mxu0 0.0
    %1491 = vmatprep.subr.mxu0 0.0
    %1492 = vmatpush1.xpose.msra.mxu0 0.0
    %1493 = vmatprep.subr.mxu0 0.0
    %1494 = vmatpush1.xpose.msra.mxu0 0.0
    %1495 = vmatprep.subr.mxu0 0.0
    %1496 = vmatpush1.xpose.msra.mxu0 0.0
    %1497 = vmatprep.subr.mxu0 0.0
    %1498 = vmatpush1.xpose.msra.mxu0 0.0
    %1499 = vmatprep.subr.mxu0 0.0
    %1500 = vmatpush1.xpose.msra.mxu0 0.0
    %1501 = vmatprep.subr.mxu0 0.0
    %1502 = vmatpush1.xpose.msra.mxu0 0.0
    %1503 = vmatprep.subr.mxu0 0.0
    %1504 = vmatpush1.xpose.msra.mxu0 0.0
    %1505 = vmatprep.subr.mxu0 0.0
    %1506 = vmatpush1.xpose.msra.mxu0 0.0
    %1507 = vmatprep.subr.mxu0 0.0
    %1508 = vmatpush1.xpose.msra.mxu0 0.0
    %1509 = vmatprep.subr.mxu0 0.0
    %1510 = vmatpush1.xpose.msra.mxu0 0.0
    %1511 = vmatprep.subr.mxu0 0.0
    %1512 = vmatpush1.xpose.msra.mxu0 0.0
    %1513 = vmatprep.subr.mxu0 0.0
    %1514 = vmatpush1.xpose.msra.mxu0 0.0
    %1515 = vmatprep.subr.mxu0 0.0
    %1516 = vmatpush1.xpose.msra.mxu0 0.0
    %1517 = vmatprep.subr.mxu0 0.0
    %1518 = vmatpush1.xpose.msra.mxu0 0.0
    %1519 = vmatprep.subr.mxu0 0.0
    %1520 = vmatpush1.xpose.msra.mxu0 0.0
    %1521 = vmatprep.subr.mxu0 0.0
    %1522 = vmatpush1.xpose.msra.mxu0 0.0
    %1523 = vmatprep.subr.mxu0 0.0
    %1524 = vmatpush1.xpose.msra.mxu0 0.0
    %1525 = vmatprep.subr.mxu0 0.0
    %1526 = vmatpush1.xpose.msra.mxu0 0.0
    %1527 = vmatprep.subr.mxu0 0.0
    %1528 = vmatpush1.xpose.msra.mxu0 0.0
    %1529 = vmatprep.subr.mxu0 0.0
    %1530 = vmatpush1.xpose.msra.mxu0 0.0
    %1531 = vmatprep.subr.mxu0 0.0
    %1532 = vmatpush1.xpose.msra.mxu0 0.0
    %1533 = vmatprep.subr.mxu0 0.0
    %1534 = vmatpush1.xpose.msra.mxu0 0.0
    %1535 = vmatprep.subr.mxu0 0.0
    %1536 = vmatpush1.xpose.msra.mxu0 0.0
    %1537 = vmatprep.subr.mxu0 0.0
    %1538 = vmatpush1.xpose.msra.mxu0 0.0
    %1539 = vmatprep.subr.mxu0 0.0
    %1540 = vmatpush1.xpose.msra.mxu0 0.0
    %1541 = vmatprep.subr.mxu0 0.0
    %1542 = vmatpush1.xpose.msra.mxu0 0.0
    %1543 = vmatprep.subr.mxu0 0.0
    %1544 = vmatpush1.xpose.msra.mxu0 0.0
    %1545 = vmatprep.subr.mxu0 0.0
    %1546 = vmatpush1.xpose.msra.mxu0 0.0
    %1547 = vmatprep.subr.mxu0 0.0
    %1548 = vmatpush1.xpose.msra.mxu0 0.0
    %1549 = vmatprep.subr.mxu0 0.0
    %1550 = vmatpush1.xpose.msra.mxu0 0.0
    %1551 = vmatprep.mubr.f32.mxu0 0.0
    %1552 = vmatmul.mubr.f32.gmra.mrb[0].mxu0 %v1483
    %v1553 = vpop.f32.mrb[0].mxu0
    %v1554 = vadd.f32 0.0, %v1553
    %v1555 = vpop.f32.mrb[0].mxu0
    %1556 = vdwg.mxu0
    %v1557 = vmul.f32 %v1476, 0.35355338
    %v1558 = vmul.f32 %v1554, 0.35355338
    %v1559 = vadd.f32 %v1557, %v110
    %v1560 = vadd.f32 %v1558, %v114
    %v1561 = vsel %vm382, %v1559, -inf
    %1562 = vmax.xlane.f32.xlu0 %v1561
    %v1563 = vpop.xlane.xlu0 %1562
    %v1564 = vsel %vm382, %v1560, -inf
    %1565 = vmax.xlane.f32.xlu0 %v1564
    %v1566 = vpop.xlane.xlu0 %1565
    %v1567 = vsub.f32 %v1559, %v1563
    %v1568 = vsub.f32 %v1560, %v1566
    %v1569 = vmul.f32 %v1567, 1.442695
    %v1570 = vpow.pop %v1569
    %v1571 = vmul.f32 %v1568, 1.442695
    %v1572 = vpow.pop %v1571
    %v1573 = vsel %vm382, %v1570, 0.0
    %1574 = vadd.xlane.f32.xlu0 %v1573
    %v1575 = vpop.xlane.xlu0 %1574
    %v1576 = vsel %vm382, %v1572, 0.0
    %1577 = vadd.xlane.f32.xlu0 %v1576
    %v1578 = vpop.xlane.xlu0 %1577
    %v1579 = vrcp.pop %v1575
    %v1580 = vrcp.pop %v1578
    %v1581 = vmul.f32 %v1570, %v1579
    %v1582 = vmul.f32 %v1572, %v1580
    %1583 = vrot.lane.b32.xlu0 %v374, 104
    %v1584 = vpop.permute.xlu0 %1583
    %v1587 = vsel %vm382, %v1581, 0
    %1589 = vmatprep.subr.mxu0 0.0
    %1590 = vmatpush1.msra.mxu0 %v1584
    %1591 = vmatprep.subr.mxu0 0.0
    %1592 = vmatpush1.msra.mxu0 0.0
    %1593 = vmatprep.subr.mxu0 0.0
    %1594 = vmatpush1.msra.mxu0 0.0
    %1595 = vmatprep.subr.mxu0 0.0
    %1596 = vmatpush1.msra.mxu0 0.0
    %1597 = vmatprep.subr.mxu0 0.0
    %1598 = vmatpush1.msra.mxu0 0.0
    %1599 = vmatprep.subr.mxu0 0.0
    %1600 = vmatpush1.msra.mxu0 0.0
    %1601 = vmatprep.subr.mxu0 0.0
    %1602 = vmatpush1.msra.mxu0 0.0
    %1603 = vmatprep.subr.mxu0 0.0
    %1604 = vmatpush1.msra.mxu0 0.0
    %1605 = vmatprep.subr.mxu0 0.0
    %1606 = vmatpush1.msra.mxu0 0.0
    %1607 = vmatprep.subr.mxu0 0.0
    %1608 = vmatpush1.msra.mxu0 0.0
    %1609 = vmatprep.subr.mxu0 0.0
    %1610 = vmatpush1.msra.mxu0 0.0
    %1611 = vmatprep.subr.mxu0 0.0
    %1612 = vmatpush1.msra.mxu0 0.0
    %1613 = vmatprep.subr.mxu0 0.0
    %1614 = vmatpush1.msra.mxu0 0.0
    %1615 = vmatprep.subr.mxu0 0.0
    %1616 = vmatpush1.msra.mxu0 0.0
    %1617 = vmatprep.subr.mxu0 0.0
    %1618 = vmatpush1.msra.mxu0 0.0
    %1619 = vmatprep.subr.mxu0 0.0
    %1620 = vmatpush1.msra.mxu0 0.0
    %1621 = vmatprep.subr.mxu0 0.0
    %1622 = vmatpush1.msra.mxu0 0.0
    %1623 = vmatprep.subr.mxu0 0.0
    %1624 = vmatpush1.msra.mxu0 0.0
    %1625 = vmatprep.subr.mxu0 0.0
    %1626 = vmatpush1.msra.mxu0 0.0
    %1627 = vmatprep.subr.mxu0 0.0
    %1628 = vmatpush1.msra.mxu0 0.0
    %1629 = vmatprep.subr.mxu0 0.0
    %1630 = vmatpush1.msra.mxu0 0.0
    %1631 = vmatprep.subr.mxu0 0.0
    %1632 = vmatpush1.msra.mxu0 0.0
    %1633 = vmatprep.subr.mxu0 0.0
    %1634 = vmatpush1.msra.mxu0 0.0
    %1635 = vmatprep.subr.mxu0 0.0
    %1636 = vmatpush1.msra.mxu0 0.0
    %1637 = vmatprep.subr.mxu0 0.0
    %1638 = vmatpush1.msra.mxu0 0.0
    %1639 = vmatprep.subr.mxu0 0.0
    %1640 = vmatpush1.msra.mxu0 0.0
    %1641 = vmatprep.subr.mxu0 0.0
    %1642 = vmatpush1.msra.mxu0 0.0
    %1643 = vmatprep.subr.mxu0 0.0
    %1644 = vmatpush1.msra.mxu0 0.0
    %1645 = vmatprep.subr.mxu0 0.0
    %1646 = vmatpush1.msra.mxu0 0.0
    %1647 = vmatprep.subr.mxu0 0.0
    %1648 = vmatpush1.msra.mxu0 0.0
    %1649 = vmatprep.subr.mxu0 0.0
    %1650 = vmatpush1.msra.mxu0 0.0
    %1651 = vmatprep.subr.mxu0 0.0
    %1652 = vmatpush1.msra.mxu0 0.0
    %1653 = vmatprep.mubr.f32.mxu0 0.0
    %1654 = vmatmul.mubr.f32.gmra.mrb[0].mxu0 %v1587
    %v1655 = vpop.f32.mrb[0].mxu0
    %v1656 = vadd.f32 0.0, %v1655
    %v1657 = vpop.f32.mrb[0].mxu0
    %1658 = vdwg.mxu0
    %1659 = vrot.lane.b32.xlu0 %v379, 104
    %v1660 = vpop.permute.xlu0 %1659
    %v1663 = vsel %vm382, %v1582, 0
    %1665 = vmatprep.subr.mxu0 0.0
    %1666 = vmatpush1.msra.mxu0 %v1660
    %1667 = vmatprep.subr.mxu0 0.0
    %1668 = vmatpush1.msra.mxu0 0.0
    %1669 = vmatprep.subr.mxu0 0.0
    %1670 = vmatpush1.msra.mxu0 0.0
    %1671 = vmatprep.subr.mxu0 0.0
    %1672 = vmatpush1.msra.mxu0 0.0
    %1673 = vmatprep.subr.mxu0 0.0
    %1674 = vmatpush1.msra.mxu0 0.0
    %1675 = vmatprep.subr.mxu0 0.0
    %1676 = vmatpush1.msra.mxu0 0.0
    %1677 = vmatprep.subr.mxu0 0.0
    %1678 = vmatpush1.msra.mxu0 0.0
    %1679 = vmatprep.subr.mxu0 0.0
    %1680 = vmatpush1.msra.mxu0 0.0
    %1681 = vmatprep.subr.mxu0 0.0
    %1682 = vmatpush1.msra.mxu0 0.0
    %1683 = vmatprep.subr.mxu0 0.0
    %1684 = vmatpush1.msra.mxu0 0.0
    %1685 = vmatprep.subr.mxu0 0.0
    %1686 = vmatpush1.msra.mxu0 0.0
    %1687 = vmatprep.subr.mxu0 0.0
    %1688 = vmatpush1.msra.mxu0 0.0
    %1689 = vmatprep.subr.mxu0 0.0
    %1690 = vmatpush1.msra.mxu0 0.0
    %1691 = vmatprep.subr.mxu0 0.0
    %1692 = vmatpush1.msra.mxu0 0.0
    %1693 = vmatprep.subr.mxu0 0.0
    %1694 = vmatpush1.msra.mxu0 0.0
    %1695 = vmatprep.subr.mxu0 0.0
    %1696 = vmatpush1.msra.mxu0 0.0
    %1697 = vmatprep.subr.mxu0 0.0
    %1698 = vmatpush1.msra.mxu0 0.0
    %1699 = vmatprep.subr.mxu0 0.0
    %1700 = vmatpush1.msra.mxu0 0.0
    %1701 = vmatprep.subr.mxu0 0.0
    %1702 = vmatpush1.msra.mxu0 0.0
    %1703 = vmatprep.subr.mxu0 0.0
    %1704 = vmatpush1.msra.mxu0 0.0
    %1705 = vmatprep.subr.mxu0 0.0
    %1706 = vmatpush1.msra.mxu0 0.0
    %1707 = vmatprep.subr.mxu0 0.0
    %1708 = vmatpush1.msra.mxu0 0.0
    %1709 = vmatprep.subr.mxu0 0.0
    %1710 = vmatpush1.msra.mxu0 0.0
    %1711 = vmatprep.subr.mxu0 0.0
    %1712 = vmatpush1.msra.mxu0 0.0
    %1713 = vmatprep.subr.mxu0 0.0
    %1714 = vmatpush1.msra.mxu0 0.0
    %1715 = vmatprep.subr.mxu0 0.0
    %1716 = vmatpush1.msra.mxu0 0.0
    %1717 = vmatprep.subr.mxu0 0.0
    %1718 = vmatpush1.msra.mxu0 0.0
    %1719 = vmatprep.subr.mxu0 0.0
    %1720 = vmatpush1.msra.mxu0 0.0
    %1721 = vmatprep.subr.mxu0 0.0
    %1722 = vmatpush1.msra.mxu0 0.0
    %1723 = vmatprep.subr.mxu0 0.0
    %1724 = vmatpush1.msra.mxu0 0.0
    %1725 = vmatprep.subr.mxu0 0.0
    %1726 = vmatpush1.msra.mxu0 0.0
    %1727 = vmatprep.subr.mxu0 0.0
    %1728 = vmatpush1.msra.mxu0 0.0
    %1729 = vmatprep.mubr.f32.mxu0 0.0
    %1730 = vmatmul.mubr.f32.gmra.mrb[0].mxu0 %v1663
    %v1731 = vpop.f32.mrb[0].mxu0
    %v1732 = vadd.f32 0.0, %v1731
    %v1733 = vpop.f32.mrb[0].mxu0
    %1734 = vdwg.mxu0
    %1737 = vrot.lane.b32.xlu0 %v1656, 24
    %v1738 = vpop.permute.xlu0 %1737
    %1739 = vrot.lane.b32.xlu0 %v1732, 24
    %v1740 = vpop.permute.xlu0 %1739
    %vm1743 = vcmask 261312
    %1744 = vst.msk [vmem:[#allocation2] sm:$0xff] %vm1743, %v1738
    %1745 = vst.msk [vmem:[#allocation2 + $0x8] sm:$0xff] %vm1743, %v1740
    %v1746 = vld [vmem:[#allocation2] sm:$0xff]
    %v1747 = vld [vmem:[#allocation2 + $0x8] sm:$0xff]
    %v1748 = vld [vmem:[#allocation6] sm:$0xff]
    %v1749 = vld [vmem:[#allocation6 + $0x8] sm:$0xff]
    %v1750 = vld [vmem:[#allocation6 + $0x10] sm:$0xff]
    %v1751 = vld [vmem:[#allocation6 + $0x18] sm:$0xff]
    %v1752 = vld [vmem:[%s9] sm:$0x1]
    %v1754 = vlaneseq
    %v1755 = vshrl.u32 %v1754, 7
    %v1756 = vsub.s32 0, %v1755
    %v1757 = vrot.slane %v1752, %v1756
    %v1760 = vsel %vm128, %v1746, 0
    %v1763 = vsel %vm128, %v1747, 0
    %1765 = vmatprep.subr.mxu0 0.0
    %1766 = vmatpush1.msra.mxu0 %v1748
    %1767 = vmatprep.subr.mxu0 0.0
    %1768 = vmatpush1.msra.mxu0 %v1749
    %1769 = vmatprep.subr.mxu0 0.0
    %1770 = vmatpush1.msra.mxu0 %v1750
    %1771 = vmatprep.subr.mxu0 0.0
    %1772 = vmatpush1.msra.mxu0 %v1751
    %1773 = vmatprep.subr.mxu0 0.0
    %1774 = vmatpush1.msra.mxu0 0.0
    %1775 = vmatprep.subr.mxu0 0.0
    %1776 = vmatpush1.msra.mxu0 0.0
    %1777 = vmatprep.subr.mxu0 0.0
    %1778 = vmatpush1.msra.mxu0 0.0
    %1779 = vmatprep.subr.mxu0 0.0
    %1780 = vmatpush1.msra.mxu0 0.0
    %1781 = vmatprep.subr.mxu0 0.0
    %1782 = vmatpush1.msra.mxu0 0.0
    %1783 = vmatprep.subr.mxu0 0.0
    %1784 = vmatpush1.msra.mxu0 0.0
    %1785 = vmatprep.subr.mxu0 0.0
    %1786 = vmatpush1.msra.mxu0 0.0
    %1787 = vmatprep.subr.mxu0 0.0
    %1788 = vmatpush1.msra.mxu0 0.0
    %1789 = vmatprep.subr.mxu0 0.0
    %1790 = vmatpush1.msra.mxu0 0.0
    %1791 = vmatprep.subr.mxu0 0.0
    %1792 = vmatpush1.msra.mxu0 0.0
    %1793 = vmatprep.subr.mxu0 0.0
    %1794 = vmatpush1.msra.mxu0 0.0
    %1795 = vmatprep.subr.mxu0 0.0
    %1796 = vmatpush1.msra.mxu0 0.0
    %1797 = vmatprep.subr.mxu0 0.0
    %1798 = vmatpush1.msra.mxu0 0.0
    %1799 = vmatprep.subr.mxu0 0.0
    %1800 = vmatpush1.msra.mxu0 0.0
    %1801 = vmatprep.subr.mxu0 0.0
    %1802 = vmatpush1.msra.mxu0 0.0
    %1803 = vmatprep.subr.mxu0 0.0
    %1804 = vmatpush1.msra.mxu0 0.0
    %1805 = vmatprep.subr.mxu0 0.0
    %1806 = vmatpush1.msra.mxu0 0.0
    %1807 = vmatprep.subr.mxu0 0.0
    %1808 = vmatpush1.msra.mxu0 0.0
    %1809 = vmatprep.subr.mxu0 0.0
    %1810 = vmatpush1.msra.mxu0 0.0
    %1811 = vmatprep.subr.mxu0 0.0
    %1812 = vmatpush1.msra.mxu0 0.0
    %1813 = vmatprep.subr.mxu0 0.0
    %1814 = vmatpush1.msra.mxu0 0.0
    %1815 = vmatprep.subr.mxu0 0.0
    %1816 = vmatpush1.msra.mxu0 0.0
    %1817 = vmatprep.subr.mxu0 0.0
    %1818 = vmatpush1.msra.mxu0 0.0
    %1819 = vmatprep.subr.mxu0 0.0
    %1820 = vmatpush1.msra.mxu0 0.0
    %1821 = vmatprep.subr.mxu0 0.0
    %1822 = vmatpush1.msra.mxu0 0.0
    %1823 = vmatprep.subr.mxu0 0.0
    %1824 = vmatpush1.msra.mxu0 0.0
    %1825 = vmatprep.subr.mxu0 0.0
    %1826 = vmatpush1.msra.mxu0 0.0
    %1827 = vmatprep.subr.mxu0 0.0
    %1828 = vmatpush1.msra.mxu0 0.0
    %1829 = vmatprep.mubr.f32.mxu0 0.0
    %1830 = vmatmul.mubr.f32.gmra.mrb[0].mxu0 %v1760
    %v1831 = vpop.f32.mrb[0].mxu0
    %v1832 = vadd.f32 %v1757, %v1831
    %v1833 = vpop.f32.mrb[0].mxu0
    %1834 = vmatprep.mubr.f32.mxu0 0.0
    %1835 = vmatmul.mubr.f32.gmra.mrb[0].mxu0 %v1763
    %v1836 = vpop.f32.mrb[0].mxu0
    %v1837 = vadd.f32 %v1757, %v1836
    %v1838 = vpop.f32.mrb[0].mxu0
    %1839 = vdwg.mxu0
    %v1840 = vadd.f32 %v101, %v1832
    %v1841 = vadd.f32 %v102, %v1837
    %v1842 = vld [vmem:[%s10] sm:$0x1]
    %v1843 = vld [vmem:[%s11] sm:$0x1]
    %v1844 = vsel %vm128, %v1840, 0.0
    %1845 = vadd.xlane.f32.xlu0 %v1844
    %v1846 = vpop.xlane.xlu0 %1845
    %v1847 = vsel %vm128, %v1841, 0.0
    %1848 = vadd.xlane.f32.xlu0 %v1847
    %v1849 = vpop.xlane.xlu0 %1848
    %v1850 = vrcp.pop 32.0
    %v1851 = vmul.f32 %v1846, %v1850
    %v1852 = vmul.f32 %v1849, %v1850
    %v1853 = vsub.f32 %v1840, %v1851
    %v1854 = vsub.f32 %v1841, %v1852
    %v1855 = vmul.f32 %v1853, %v1853
    %v1856 = vmul.f32 %v1854, %v1854
    %v1857 = vsel %vm128, %v1855, 0.0
    %1858 = vadd.xlane.f32.xlu0 %v1857
    %v1859 = vpop.xlane.xlu0 %1858
    %v1860 = vsel %vm128, %v1856, 0.0
    %1861 = vadd.xlane.f32.xlu0 %v1860
    %v1862 = vpop.xlane.xlu0 %1861
    %v1863 = vmul.f32 %v1859, %v1850
    %v1864 = vmul.f32 %v1862, %v1850
    %v1865 = vadd.f32 %v1863, 1e-12
    %v1866 = vadd.f32 %v1864, 1e-12
    %v1867 = vrsqrt.pop %v1865
    %v1868 = vrsqrt.pop %v1866
    %v1869 = vmul.f32 %v1853, %v1867
    %v1870 = vmul.f32 %v1854, %v1868
    %v1872 = vlaneseq
    %v1873 = vshrl.u32 %v1872, 7
    %v1874 = vsub.s32 0, %v1873
    %v1875 = vrot.slane %v1842, %v1874
    %v1877 = vmul.f32 %v1869, %v1875
    %v1878 = vmul.f32 %v1870, %v1875
    %v1880 = vlaneseq
    %v1881 = vshrl.u32 %v1880, 7
    %v1882 = vsub.s32 0, %v1881
    %v1883 = vrot.slane %v1843, %v1882
    %v1885 = vadd.f32 %v1877, %v1883
    %v1886 = vadd.f32 %v1878, %v1883
    %v1887 = vld [vmem:[#allocation8] sm:$0xff]
    %v1888 = vld [vmem:[#allocation8 + $0x8] sm:$0xff]
    %v1889 = vld [vmem:[#allocation8 + $0x10] sm:$0xff]
    %v1890 = vld [vmem:[#allocation8 + $0x18] sm:$0xff]
    %v1891 = vld [vmem:[%s13] sm:$0x1]
    %v1893 = vlaneseq
    %v1894 = vshrl.u32 %v1893, 7
    %v1895 = vsub.s32 0, %v1894
    %v1896 = vrot.slane %v1891, %v1895
    %v1899 = vsel %vm128, %v1885, 0
    %v1902 = vsel %vm128, %v1886, 0
    %1904 = vmatprep.subr.mxu0 0.0
    %1905 = vmatpush1.msra.mxu0 %v1887
    %1906 = vmatprep.subr.mxu0 0.0
    %1907 = vmatpush1.msra.mxu0 %v1888
    %1908 = vmatprep.subr.mxu0 0.0
    %1909 = vmatpush1.msra.mxu0 %v1889
    %1910 = vmatprep.subr.mxu0 0.0
    %1911 = vmatpush1.msra.mxu0 %v1890
    %1912 = vmatprep.subr.mxu0 0.0
    %1913 = vmatpush1.msra.mxu0 0.0
    %1914 = vmatprep.subr.mxu0 0.0
    %1915 = vmatpush1.msra.mxu0 0.0
    %1916 = vmatprep.subr.mxu0 0.0
    %1917 = vmatpush1.msra.mxu0 0.0
    %1918 = vmatprep.subr.mxu0 0.0
    %1919 = vmatpush1.msra.mxu0 0.0
    %1920 = vmatprep.subr.mxu0 0.0
    %1921 = vmatpush1.msra.mxu0 0.0
    %1922 = vmatprep.subr.mxu0 0.0
    %1923 = vmatpush1.msra.mxu0 0.0
    %1924 = vmatprep.subr.mxu0 0.0
    %1925 = vmatpush1.msra.mxu0 0.0
    %1926 = vmatprep.subr.mxu0 0.0
    %1927 = vmatpush1.msra.mxu0 0.0
    %1928 = vmatprep.subr.mxu0 0.0
    %1929 = vmatpush1.msra.mxu0 0.0
    %1930 = vmatprep.subr.mxu0 0.0
    %1931 = vmatpush1.msra.mxu0 0.0
    %1932 = vmatprep.subr.mxu0 0.0
    %1933 = vmatpush1.msra.mxu0 0.0
    %1934 = vmatprep.subr.mxu0 0.0
    %1935 = vmatpush1.msra.mxu0 0.0
    %1936 = vmatprep.subr.mxu0 0.0
    %1937 = vmatpush1.msra.mxu0 0.0
    %1938 = vmatprep.subr.mxu0 0.0
    %1939 = vmatpush1.msra.mxu0 0.0
    %1940 = vmatprep.subr.mxu0 0.0
    %1941 = vmatpush1.msra.mxu0 0.0
    %1942 = vmatprep.subr.mxu0 0.0
    %1943 = vmatpush1.msra.mxu0 0.0
    %1944 = vmatprep.subr.mxu0 0.0
    %1945 = vmatpush1.msra.mxu0 0.0
    %1946 = vmatprep.subr.mxu0 0.0
    %1947 = vmatpush1.msra.mxu0 0.0
    %1948 = vmatprep.subr.mxu0 0.0
    %1949 = vmatpush1.msra.mxu0 0.0
    %1950 = vmatprep.subr.mxu0 0.0
    %1951 = vmatpush1.msra.mxu0 0.0
    %1952 = vmatprep.subr.mxu0 0.0
    %1953 = vmatpush1.msra.mxu0 0.0
    %1954 = vmatprep.subr.mxu0 0.0
    %1955 = vmatpush1.msra.mxu0 0.0
    %1956 = vmatprep.subr.mxu0 0.0
    %1957 = vmatpush1.msra.mxu0 0.0
    %1958 = vmatprep.subr.mxu0 0.0
    %1959 = vmatpush1.msra.mxu0 0.0
    %1960 = vmatprep.subr.mxu0 0.0
    %1961 = vmatpush1.msra.mxu0 0.0
    %1962 = vmatprep.subr.mxu0 0.0
    %1963 = vmatpush1.msra.mxu0 0.0
    %1964 = vmatprep.subr.mxu0 0.0
    %1965 = vmatpush1.msra.mxu0 0.0
    %1966 = vmatprep.subr.mxu0 0.0
    %1967 = vmatpush1.msra.mxu0 0.0
    %1968 = vmatprep.mubr.f32.mxu0 0.0
    %1969 = vmatmul.mubr.f32.gmra.mrb[0].mxu0 %v1899
    %v1970 = vpop.f32.mrb[0].mxu0
    %v1971 = vadd.f32 %v1896, %v1970
    %v1972 = vpop.f32.mrb[0].mxu0
    %1973 = vmatprep.mubr.f32.mxu0 0.0
    %1974 = vmatmul.mubr.f32.gmra.mrb[0].mxu0 %v1902
    %v1975 = vpop.f32.mrb[0].mxu0
    %v1976 = vadd.f32 %v1896, %v1975
    %v1977 = vpop.f32.mrb[0].mxu0
    %1978 = vdwg.mxu0
    %v1979 = vmul.f32 %v1971, 0.5
    %v1980 = vmul.f32 %v1976, 0.5
    %v1981 = vmul.f32 %v1971, 0.70710677
    %v1982 = vmul.f32 %v1976, 0.70710677
    %v1983 = verf.f32.pop %v1981
    %v1984 = verf.f32.pop %v1982
    %v1985 = vadd.f32 %v1983, 1.0
    %v1986 = vadd.f32 %v1984, 1.0
    %v1987 = vmul.f32 %v1979, %v1985
    %v1988 = vmul.f32 %v1980, %v1986
    %v1989 = vld [vmem:[%s14] sm:$0xff]
    %v1990 = vld [vmem:[%s14 + $0x8] sm:$0xff]
    %v1991 = vld [vmem:[%s14 + $0x10] sm:$0xff]
    %v1992 = vld [vmem:[%s14 + $0x18] sm:$0xff]
    %v1993 = vld [vmem:[%s14 + $0x20] sm:$0xff]
    %v1994 = vld [vmem:[%s14 + $0x28] sm:$0xff]
    %v1995 = vld [vmem:[%s14 + $0x30] sm:$0xff]
    %v1996 = vld [vmem:[%s14 + $0x38] sm:$0xff]
    %v1997 = vld [vmem:[%s15] sm:$0x1]
    %v1999 = vlaneseq
    %v2000 = vshrl.u32 %v1999, 7
    %v2001 = vsub.s32 0, %v2000
    %v2002 = vrot.slane %v1997, %v2001
    %vm2004 = vcmask 523264
    %v2006 = vsel %vm2004, %v1987, 0
    %v2009 = vsel %vm2004, %v1988, 0
    %2011 = vmatprep.subr.mxu0 0.0
    %2012 = vmatpush1.msra.mxu0 %v1989
    %2013 = vmatprep.subr.mxu0 0.0
    %2014 = vmatpush1.msra.mxu0 %v1990
    %2015 = vmatprep.subr.mxu0 0.0
    %2016 = vmatpush1.msra.mxu0 %v1991
    %2017 = vmatprep.subr.mxu0 0.0
    %2018 = vmatpush1.msra.mxu0 %v1992
    %2019 = vmatprep.subr.mxu0 0.0
    %2020 = vmatpush1.msra.mxu0 %v1993
    %2021 = vmatprep.subr.mxu0 0.0
    %2022 = vmatpush1.msra.mxu0 %v1994
    %2023 = vmatprep.subr.mxu0 0.0
    %2024 = vmatpush1.msra.mxu0 %v1995
    %2025 = vmatprep.subr.mxu0 0.0
    %2026 = vmatpush1.msra.mxu0 %v1996
    %2027 = vmatprep.subr.mxu0 0.0
    %2028 = vmatpush1.msra.mxu0 0.0
    %2029 = vmatprep.subr.mxu0 0.0
    %2030 = vmatpush1.msra.mxu0 0.0
    %2031 = vmatprep.subr.mxu0 0.0
    %2032 = vmatpush1.msra.mxu0 0.0
    %2033 = vmatprep.subr.mxu0 0.0
    %2034 = vmatpush1.msra.mxu0 0.0
    %2035 = vmatprep.subr.mxu0 0.0
    %2036 = vmatpush1.msra.mxu0 0.0
    %2037 = vmatprep.subr.mxu0 0.0
    %2038 = vmatpush1.msra.mxu0 0.0
    %2039 = vmatprep.subr.mxu0 0.0
    %2040 = vmatpush1.msra.mxu0 0.0
    %2041 = vmatprep.subr.mxu0 0.0
    %2042 = vmatpush1.msra.mxu0 0.0
    %2043 = vmatprep.subr.mxu0 0.0
    %2044 = vmatpush1.msra.mxu0 0.0
    %2045 = vmatprep.subr.mxu0 0.0
    %2046 = vmatpush1.msra.mxu0 0.0
    %2047 = vmatprep.subr.mxu0 0.0
    %2048 = vmatpush1.msra.mxu0 0.0
    %2049 = vmatprep.subr.mxu0 0.0
    %2050 = vmatpush1.msra.mxu0 0.0
    %2051 = vmatprep.subr.mxu0 0.0
    %2052 = vmatpush1.msra.mxu0 0.0
    %2053 = vmatprep.subr.mxu0 0.0
    %2054 = vmatpush1.msra.mxu0 0.0
    %2055 = vmatprep.subr.mxu0 0.0
    %2056 = vmatpush1.msra.mxu0 0.0
    %2057 = vmatprep.subr.mxu0 0.0
    %2058 = vmatpush1.msra.mxu0 0.0
    %2059 = vmatprep.subr.mxu0 0.0
    %2060 = vmatpush1.msra.mxu0 0.0
    %2061 = vmatprep.subr.mxu0 0.0
    %2062 = vmatpush1.msra.mxu0 0.0
    %2063 = vmatprep.subr.mxu0 0.0
    %2064 = vmatpush1.msra.mxu0 0.0
    %2065 = vmatprep.subr.mxu0 0.0
    %2066 = vmatpush1.msra.mxu0 0.0
    %2067 = vmatprep.subr.mxu0 0.0
    %2068 = vmatpush1.msra.mxu0 0.0
    %2069 = vmatprep.subr.mxu0 0.0
    %2070 = vmatpush1.msra.mxu0 0.0
    %2071 = vmatprep.subr.mxu0 0.0
    %2072 = vmatpush1.msra.mxu0 0.0
    %2073 = vmatprep.subr.mxu0 0.0
    %2074 = vmatpush1.msra.mxu0 0.0
    %2075 = vmatprep.mubr.f32.mxu0 0.0
    %2076 = vmatmul.mubr.f32.gmra.mrb[0].mxu0 %v2006
    %v2077 = vpop.f32.mrb[0].mxu0
    %v2078 = vadd.f32 %v2002, %v2077
    %v2079 = vpop.f32.mrb[0].mxu0
    %2080 = vmatprep.mubr.f32.mxu0 0.0
    %2081 = vmatmul.mubr.f32.gmra.mrb[0].mxu0 %v2009
    %v2082 = vpop.f32.mrb[0].mxu0
    %v2083 = vadd.f32 %v2002, %v2082
    %v2084 = vpop.f32.mrb[0].mxu0
    %2085 = vdwg.mxu0
    %v2086 = vadd.f32 %v1885, %v2078
    %v2087 = vadd.f32 %v1886, %v2083
    %v2088 = vld [vmem:[%s16] sm:$0x1]
    %v2089 = vld [vmem:[%s17] sm:$0x1]
    %v2090 = vsel %vm128, %v2086, 0.0
    %2091 = vadd.xlane.f32.xlu0 %v2090
    %v2092 = vpop.xlane.xlu0 %2091
    %v2093 = vsel %vm128, %v2087, 0.0
    %2094 = vadd.xlane.f32.xlu0 %v2093
    %v2095 = vpop.xlane.xlu0 %2094
    %v2096 = vmul.f32 %v2092, %v1850
    %v2097 = vmul.f32 %v2095, %v1850
    %v2098 = vsub.f32 %v2086, %v2096
    %v2099 = vsub.f32 %v2087, %v2097
    %v2100 = vmul.f32 %v2098, %v2098
    %v2101 = vmul.f32 %v2099, %v2099
    %v2102 = vsel %vm128, %v2100, 0.0
    %2103 = vadd.xlane.f32.xlu0 %v2102
    %v2104 = vpop.xlane.xlu0 %2103
    %v2105 = vsel %vm128, %v2101, 0.0
    %2106 = vadd.xlane.f32.xlu0 %v2105
    %v2107 = vpop.xlane.xlu0 %2106
    %v2108 = vmul.f32 %v2104, %v1850
    %v2109 = vmul.f32 %v2107, %v1850
    %v2110 = vadd.f32 %v2108, 1e-12
    %v2111 = vadd.f32 %v2109, 1e-12
    %v2112 = vrsqrt.pop %v2110
    %v2113 = vrsqrt.pop %v2111
    %v2114 = vmul.f32 %v2098, %v2112
    %v2115 = vmul.f32 %v2099, %v2113
    %v2117 = vlaneseq
    %v2118 = vshrl.u32 %v2117, 7
    %v2119 = vsub.s32 0, %v2118
    %v2120 = vrot.slane %v2088, %v2119
    %v2122 = vmul.f32 %v2114, %v2120
    %v2123 = vmul.f32 %v2115, %v2120
    %v2125 = vlaneseq
    %v2126 = vshrl.u32 %v2125, 7
    %v2127 = vsub.s32 0, %v2126
    %v2128 = vrot.slane %v2089, %v2127
    %v2130 = vadd.f32 %v2122, %v2128
    %v2131 = vadd.f32 %v2123, %v2128
    %2132 = vst.msk [vmem:[#allocation9] sm:$0xff] %vm128, %v2130
    %2133 = vst.msk [vmem:[#allocation9 + $0x8] sm:$0xff] %vm128, %v2131
    // Predicated region
    $region86: #{tpu_custom_call.1} parent=1 // pred_check
      _
    $region87: #{tpu_custom_call.1} parent=1 // pred_check_branch
      %2135 = sbr.rel (0) target = $region89
    $region88: #{tpu_custom_call.1} parent=1 // pred_region
      %s2137 = ssub.s32 256, 256
      %2138 = vsyncadd [#allocation5], %s2137
      %s2139 = sshll.u32 [#allocation9], 4
      %s2140 = int_to_ptr.vmem [resolvable:$true] %s2139
      %2145 = dma.vmem_to_hbm [thread:$0]  %s2140, 256, %s18, [#allocation5], 128, 128, 8
    $region89: #{tpu_custom_call.1} parent=1 // pred_fallthru
      _
    // Predicated region
    $region90: #{tpu_custom_call.1} parent=1 // pred_check
      _
    $region91: #{tpu_custom_call.1} parent=1 // pred_check_branch
      %2147 = sbr.rel (0) target = $region93
    $region92: #{tpu_custom_call.1} parent=1 // pred_region
      %2148 = dma.done [#allocation5], 256
    $region93: #{tpu_custom_call.1} parent=1 // pred_fallthru
      _
    %2149 = vsyncpa [#allocation4], 1
    %2150 = vsyncpa [#allocation7], 1
    %2151 = vsyncpa [#allocation5], 1

</llo_original>
